<compile_context>
chip_gen: v7x
topology: tpu7x:2x2x1
jax: 0.10.0
libtpu: 0.0.40
codegen_flags: <defaults>
</compile_context>

<pallas_src>
import functools

import jax
import jax.numpy as jnp
from jax import lax
from jax.experimental import pallas as pl
from jax.experimental.pallas import tpu as pltpu

CHANNELS = 192
REDUCTION = 16
HIDDEN = CHANNELS // REDUCTION  # 12

# Keep 2x(double-buffered in/out) blocks comfortably under the smallest scoped-VMEM
# budget (v5e 16 MiB default, v7x 32 MiB default / 64 MiB physical).
_MAX_TILE_HW = 2048
_VMEM_LIMIT = 32 * 1024 * 1024


def _pick_tile_hw(hw: int, max_tile: int = _MAX_TILE_HW) -> int:
    """Largest multiple-of-128 divisor of hw that is <= max_tile (falls back to hw)."""
    if hw <= max_tile:
        return hw
    t = (max_tile // 128) * 128
    while t >= 128:
        if hw % t == 0:
            return t
        t -= 128
    return hw  # no nice divisor; fall back to whole spatial extent (still correct)


# ---------------------------------------------------------------------------
# Kernel 1: pooled gate  y[n, c] = sigmoid(W2 @ relu(W1 @ mean_hw(r[n]) + b1) + b2)
# ---------------------------------------------------------------------------
def _make_gate_kernel(C: int, HW: int, TILE_HW: int):
    n_full = TILE_HW // 128
    tail = TILE_HW - n_full * 128
    inv_hw = 1.0 / float(HW)

    def gate_kernel(res_ref, w1_ref, b1_ref, w2_ref, b2_ref, y_ref, acc_ref):
        t = pl.program_id(1)

        @pl.when(t == 0)
        def _init():
            acc_ref[...] = jnp.zeros_like(acc_ref)

        # Partial sum over this HW tile: VPU adds across 128-lane chunks (f32 accumulation),
        # then a single cross-lane (XLU) reduce per tile.
        col = jnp.zeros((C, 1), jnp.float32)
        if n_full > 0:
            partial = res_ref[0, :, 0:128].astype(jnp.float32)
            for j in range(1, n_full):
                lo = j * 128
                partial = partial + res_ref[0, :, lo:lo + 128].astype(jnp.float32)
            col = col + jnp.sum(partial, axis=-1, keepdims=True)
        if tail > 0:
            col = col + jnp.sum(
                res_ref[0, :, n_full * 128:TILE_HW].astype(jnp.float32),
                axis=-1, keepdims=True)
        acc_ref[...] = acc_ref[...] + col

        @pl.when(t == pl.num_programs(1) - 1)
        def _finalize():
            avg = acc_ref[...] * inv_hw                                        # (C, 1) f32
            h = jnp.dot(w1_ref[...], avg,
                        preferred_element_type=jnp.float32) + b1_ref[...]      # (HIDDEN, 1)
            h = jnp.maximum(h, 0.0)
            g = jnp.dot(w2_ref[...], h,
                        preferred_element_type=jnp.float32) + b2_ref[...]      # (C, 1)
            y_ref[0] = jax.nn.sigmoid(g).astype(y_ref.dtype)

    return gate_kernel


# ---------------------------------------------------------------------------
# Kernel 2: out = res * y + skip   (fused channel scaling + RCAB residual add)
# ---------------------------------------------------------------------------
def _scale_residual_kernel(res_ref, skip_ref, y_ref, o_ref):
    # Stay in the input dtype; y is a (C, 1) per-channel gate broadcast over lanes.
    o_ref[0] = (res_ref[0] * y_ref[0] + skip_ref[0]).astype(o_ref.dtype)


def channel_attention_residual(res, skip, w1, b1, w2, b2):
    """res, skip: (N, C, H, W);  w1: (HIDDEN, C); b1: (HIDDEN,); w2: (C, HIDDEN); b2: (C,)."""
    N, C, H, W = res.shape
    assert C == CHANNELS
    HW = H * W
    TILE_HW = _pick_tile_hw(HW)
    n_t = HW // TILE_HW

    res2 = res.reshape(N, C, HW)
    skip2 = skip.reshape(N, C, HW)
    w1f = w1.astype(jnp.float32)
    w2f = w2.astype(jnp.float32)
    b1c = b1.reshape(HIDDEN, 1).astype(jnp.float32)
    b2c = b2.reshape(C, 1).astype(jnp.float32)

    # ---- Pass 1: per-(n, c) gate (O(N*C) output, one streaming read of res). ----
    gate_kernel = _make_gate_kernel(C, HW, TILE_HW)
    y = pl.pallas_call(
        gate_kernel,
        out_shape=jax.ShapeDtypeStruct((N, C, 1), res.dtype),
        grid_spec=pltpu.PrefetchScalarGridSpec(
            num_scalar_prefetch=0,
            grid=(N, n_t),
            in_specs=[
                pl.BlockSpec((1, C, TILE_HW), lambda n, t: (n, 0, t)),
                pl.BlockSpec((HIDDEN, C), lambda n, t: (0, 0)),
                pl.BlockSpec((HIDDEN, 1), lambda n, t: (0, 0)),
                pl.BlockSpec((C, HIDDEN), lambda n, t: (0, 0)),
                pl.BlockSpec((C, 1), lambda n, t: (0, 0)),
            ],
            out_specs=pl.BlockSpec((1, C, 1), lambda n, t: (n, 0, 0)),
            scratch_shapes=[pltpu.VMEM((C, 1), jnp.float32)],
        ),
        compiler_params=pltpu.CompilerParams(
            dimension_semantics=("parallel", "arbitrary"),
            vmem_limit_bytes=_VMEM_LIMIT,
        ),
    )(res2, w1f, b1c, w2f, b2c)

    # ---- Pass 2: streaming scale + residual, tiled over HW, megacore-parallel. ----
    out = pl.pallas_call(
        _scale_residual_kernel,
        out_shape=jax.ShapeDtypeStruct((N, C, HW), res.dtype),
        grid_spec=pltpu.PrefetchScalarGridSpec(
            num_scalar_prefetch=0,
            grid=(N, n_t),
            in_specs=[
                pl.BlockSpec((1, C, TILE_HW), lambda n, t: (n, 0, t)),
                pl.BlockSpec((1, C, TILE_HW), lambda n, t: (n, 0, t)),
                pl.BlockSpec((1, C, 1), lambda n, t: (n, 0, 0)),
            ],
            out_specs=pl.BlockSpec((1, C, TILE_HW), lambda n, t: (n, 0, t)),
        ),
        input_output_aliases={0: 0},  # conv output is dead after this; reuse its HBM buffer
        compiler_params=pltpu.CompilerParams(
            dimension_semantics=("parallel", "parallel"),
            vmem_limit_bytes=_VMEM_LIMIT,
        ),
    )(res2, skip2, y)

    return out.reshape(N, C, H, W)


# ---------------------------------------------------------------------------
# RCAB body (3x3 convs + PReLU) via XLA, then Pallas channel-attention + residual.
# ---------------------------------------------------------------------------
def _conv3x3(x, w, b):
    out = lax.conv_general_dilated(
        x, w, window_strides=(1, 1), padding=((1, 1), (1, 1)),
        dimension_numbers=("NCHW", "OIHW", "NCHW"))
    return out + b[None, :, None, None]


def _prelu(x, a):
    return jnp.where(x > 0, x, a[None, :, None, None] * x)


def rcab_forward(x, p):
    r = _conv3x3(x, p["conv1_w"], p["conv1_b"])
    r = _prelu(r, p["prelu_a"])
    r = _conv3x3(r, p["conv2_w"], p["conv2_b"])
    # channel attention * r + x  (residual fused into the Pallas scale kernel)
    return channel_attention_residual(r, x, p["ca_w1"], p["ca_b1"], p["ca_w2"], p["ca_b2"])


def _reference_rcab(x, p):
    r = _conv3x3(x, p["conv1_w"], p["conv1_b"])
    r = _prelu(r, p["prelu_a"])
    r = _conv3x3(r, p["conv2_w"], p["conv2_b"])
    avg = jnp.mean(r.astype(jnp.float32), axis=(2, 3))                           # (N, C)
    h = jnp.maximum(avg @ p["ca_w1"].astype(jnp.float32).T + p["ca_b1"], 0.0)    # (N, HIDDEN)
    y = jax.nn.sigmoid(h @ p["ca_w2"].astype(jnp.float32).T + p["ca_b2"])        # (N, C)
    return r * y[:, :, None, None].astype(r.dtype) + x


if __name__ == "__main__":
    key = jax.random.PRNGKey(0)
    ks = jax.random.split(key, 10)

    N, H, W = 2, 16, 16
    x = jax.random.normal(ks[0], (N, CHANNELS, H, W), dtype=jnp.float32)

    params = dict(
        conv1_w=jax.random.normal(ks[1], (CHANNELS, CHANNELS, 3, 3), jnp.float32) * 0.02,
        conv1_b=jax.random.normal(ks[2], (CHANNELS,), jnp.float32) * 0.02,
        prelu_a=jnp.float32(0.25) + jax.random.normal(ks[3], (CHANNELS,), jnp.float32) * 0.05,
        conv2_w=jax.random.normal(ks[4], (CHANNELS, CHANNELS, 3, 3), jnp.float32) * 0.02,
        conv2_b=jax.random.normal(ks[5], (CHANNELS,), jnp.float32) * 0.02,
        ca_w1=jax.random.normal(ks[6], (HIDDEN, CHANNELS), jnp.float32) * 0.05,
        ca_b1=jax.random.normal(ks[7], (HIDDEN,), jnp.float32) * 0.05,
        ca_w2=jax.random.normal(ks[8], (CHANNELS, HIDDEN), jnp.float32) * 0.05,
        ca_b2=jax.random.normal(ks[9], (CHANNELS,), jnp.float32) * 0.05,
    )

    out = jax.jit(rcab_forward)(x, params)
    out = jax.block_until_ready(out)

    ref = _reference_rcab(x, params)
    assert out.shape == x.shape
    max_err = float(jnp.max(jnp.abs(out - ref)))
    assert jnp.allclose(out, ref, atol=1e-3, rtol=1e-3), f"max abs err = {max_err}"

    print("KERNEL_OK")
</pallas_src>

<mosaic_0001>
module attributes {stable_mosaic.version = 11 : i64} {
  func.func @gate_kernel(%arg0: i32, %arg1: i32, %arg2: memref<1x192x256xf32, #tpu.memory_space<vmem>>, %arg3: memref<12x192xf32, #tpu.memory_space<vmem>>, %arg4: memref<12x1xf32, #tpu.memory_space<vmem>>, %arg5: memref<192x12xf32, #tpu.memory_space<vmem>>, %arg6: memref<192x1xf32, #tpu.memory_space<vmem>>, %arg7: memref<1x192x1xf32, #tpu.memory_space<vmem>>, %arg8: memref<192x1xf32, #tpu.memory_space<vmem>>) attributes {dimension_semantics = [#tpu.dimension_semantics<parallel>, #tpu.dimension_semantics<arbitrary>], iteration_bounds = array<i64: 2, 1>, scalar_prefetch = 0 : i64, scratch_operands = 1 : i64, tpu.core_type = #tpu.core_type<tc>, window_params = [{transform_indices = @transform_0, window_bounds = array<i64: 1, 192, 256>}, {pipeline_mode = #tpu.pipeline_mode<synchronous>, transform_indices = @transform_1, window_bounds = array<i64: 12, 192>}, {pipeline_mode = #tpu.pipeline_mode<synchronous>, transform_indices = @transform_2, window_bounds = array<i64: 12, 1>}, {pipeline_mode = #tpu.pipeline_mode<synchronous>, transform_indices = @transform_3, window_bounds = array<i64: 192, 12>}, {pipeline_mode = #tpu.pipeline_mode<synchronous>, transform_indices = @transform_4, window_bounds = array<i64: 192, 1>}, {transform_indices = @transform_5, window_bounds = array<i64: 1, 192, 1>}]} {
    %c0_i32 = arith.constant 0 : i32
    %0 = arith.cmpi eq, %arg1, %c0_i32 : i32
    %1 = arith.extui %0 : i1 to i32
    %c0_i32_0 = arith.constant 0 : i32
    %2 = arith.cmpi ne, %1, %c0_i32_0 : i32
    scf.if %2 {
      %cst_12 = arith.constant 0.000000e+00 : f32
      %18 = vector.broadcast %cst_12 : f32 to vector<192x1xf32>
      %c0_13 = arith.constant 0 : index
      %c0_14 = arith.constant 0 : index
      %19 = vector.load %arg8[%c0_13, %c0_14] : memref<192x1xf32, #tpu.memory_space<vmem>>, vector<192x1xf32>
      tpu.vector_store %arg8[%c0_13, %c0_14], %18 {strides = array<i32>} : memref<192x1xf32, #tpu.memory_space<vmem>>, vector<192x1xf32>,
    } else {
    }
    %cst = arith.constant 0.000000e+00 : f32
    %3 = vector.broadcast %cst : f32 to vector<192x1xf32>
    %c0 = arith.constant 0 : index
    %c0_1 = arith.constant 0 : index
    %c0_2 = arith.constant 0 : index
    %4 = vector.load %arg2[%c0, %c0_1, %c0_2] : memref<1x192x256xf32, #tpu.memory_space<vmem>>, vector<1x192x128xf32>
    %5 = vector.shape_cast %4 : vector<1x192x128xf32> to vector<192x128xf32>
    %c0_3 = arith.constant 0 : index
    %c0_4 = arith.constant 0 : index
    %c128 = arith.constant 128 : index
    %6 = vector.load %arg2[%c0_3, %c0_4, %c128] : memref<1x192x256xf32, #tpu.memory_space<vmem>>, vector<1x192x128xf32>
    %7 = vector.shape_cast %6 : vector<1x192x128xf32> to vector<192x128xf32>
    %8 = arith.addf %5, %7 : vector<192x128xf32>
    %cst_5 = arith.constant dense<0.000000e+00> : vector<192xf32>
    %9 = vector.multi_reduction <add>, %8, %cst_5 [1] : vector<192x128xf32> to vector<192xf32>
    %10 = vector.shape_cast %9 : vector<192xf32> to vector<192x1xf32>
    %11 = arith.addf %3, %10 : vector<192x1xf32>
    %c0_6 = arith.constant 0 : index
    %c0_7 = arith.constant 0 : index
    %12 = vector.load %arg8[%c0_6, %c0_7] : memref<192x1xf32, #tpu.memory_space<vmem>>, vector<192x1xf32>
    %13 = arith.addf %12, %11 : vector<192x1xf32>
    %c0_8 = arith.constant 0 : index
    %c0_9 = arith.constant 0 : index
    %14 = vector.load %arg8[%c0_8, %c0_9] : memref<192x1xf32, #tpu.memory_space<vmem>>, vector<192x1xf32>
    tpu.vector_store %arg8[%c0_8, %c0_9], %13 {strides = array<i32>} : memref<192x1xf32, #tpu.memory_space<vmem>>, vector<192x1xf32>,
    %c0_i32_10 = arith.constant 0 : i32
    %15 = arith.cmpi eq, %arg1, %c0_i32_10 : i32
    %16 = arith.extui %15 : i1 to i32
    %c0_i32_11 = arith.constant 0 : i32
    %17 = arith.cmpi ne, %16, %c0_i32_11 : i32
    scf.if %17 {
      %c0_12 = arith.constant 0 : index
      %c0_13 = arith.constant 0 : index
      %18 = vector.load %arg8[%c0_12, %c0_13] : memref<192x1xf32, #tpu.memory_space<vmem>>, vector<192x1xf32>
      %cst_14 = arith.constant 3.906250e-03 : f32
      %19 = vector.broadcast %cst_14 : f32 to vector<192x1xf32>
      %20 = arith.mulf %18, %19 : vector<192x1xf32>
      %c0_15 = arith.constant 0 : index
      %c0_16 = arith.constant 0 : index
      %21 = vector.load %arg3[%c0_15, %c0_16] : memref<12x192xf32, #tpu.memory_space<vmem>>, vector<12x192xf32>
      %cst_17 = arith.constant dense<0.000000e+00> : vector<12x1xf32>
      %22 = tpu.matmul %21, %20, %cst_17 {dimension_numbers = #tpu.dot_dimension_numbers<[1], [0], [0], [1], [0, 0, 1, 1], [], []>} : vector<12x192xf32>, vector<192x1xf32>, vector<12x1xf32> -> vector<12x1xf32>
      %c0_18 = arith.constant 0 : index
      %c0_19 = arith.constant 0 : index
      %23 = vector.load %arg4[%c0_18, %c0_19] : memref<12x1xf32, #tpu.memory_space<vmem>>, vector<12x1xf32>
      %24 = arith.addf %22, %23 : vector<12x1xf32>
      %cst_20 = arith.constant 0.000000e+00 : f32
      %25 = vector.broadcast %cst_20 : f32 to vector<12x1xf32>
      %26 = arith.maximumf %24, %25 : vector<12x1xf32>
      %c0_21 = arith.constant 0 : index
      %c0_22 = arith.constant 0 : index
      %27 = vector.load %arg5[%c0_21, %c0_22] : memref<192x12xf32, #tpu.memory_space<vmem>>, vector<192x12xf32>
      %cst_23 = arith.constant dense<0.000000e+00> : vector<192x1xf32>
      %28 = tpu.matmul %27, %26, %cst_23 {dimension_numbers = #tpu.dot_dimension_numbers<[1], [0], [0], [1], [0, 0, 1, 1], [], []>} : vector<192x12xf32>, vector<12x1xf32>, vector<192x1xf32> -> vector<192x1xf32>
      %c0_24 = arith.constant 0 : index
      %c0_25 = arith.constant 0 : index
      %29 = vector.load %arg6[%c0_24, %c0_25] : memref<192x1xf32, #tpu.memory_space<vmem>>, vector<192x1xf32>
      %30 = arith.addf %28, %29 : vector<192x1xf32>
      %31 = arith.negf %30 : vector<192x1xf32>
      %32 = math.exp %31 : vector<192x1xf32>
      %cst_26 = arith.constant 1.000000e+00 : f32
      %33 = vector.broadcast %cst_26 : f32 to vector<192x1xf32>
      %34 = arith.addf %33, %32 : vector<192x1xf32>
      %35 = arith.divf %33, %34 : vector<192x1xf32>
      %c0_27 = arith.constant 0 : index
      %c0_28 = arith.constant 0 : index
      %c0_29 = arith.constant 0 : index
      %36 = vector.load %arg7[%c0_27, %c0_28, %c0_29] : memref<1x192x1xf32, #tpu.memory_space<vmem>>, vector<1x192x1xf32>
      %37 = vector.shape_cast %36 : vector<1x192x1xf32> to vector<192x1xf32>
      %38 = vector.shape_cast %35 : vector<192x1xf32> to vector<1x192x1xf32>
      tpu.vector_store %arg7[%c0_27, %c0_28, %c0_29], %38 {strides = array<i32>} : memref<1x192x1xf32, #tpu.memory_space<vmem>>, vector<1x192x1xf32>,
    } else {
    }
    return
  }
  func.func @transform_0(%arg0: i32, %arg1: i32) -> (i32, i32, i32) {
    %c0_i32 = arith.constant 0 : i32
    %c0_i32_0 = arith.constant 0 : i32
    return %arg0, %c0_i32, %arg1 : i32, i32, i32
  }
  func.func @transform_1(%arg0: i32, %arg1: i32) -> (i32, i32) {
    %c0_i32 = arith.constant 0 : i32
    %c0_i32_0 = arith.constant 0 : i32
    %c0_i32_1 = arith.constant 0 : i32
    return %c0_i32, %c0_i32_0 : i32, i32
  }
  func.func @transform_2(%arg0: i32, %arg1: i32) -> (i32, i32) {
    %c0_i32 = arith.constant 0 : i32
    %c0_i32_0 = arith.constant 0 : i32
    %c0_i32_1 = arith.constant 0 : i32
    return %c0_i32, %c0_i32_0 : i32, i32
  }
  func.func @transform_3(%arg0: i32, %arg1: i32) -> (i32, i32) {
    %c0_i32 = arith.constant 0 : i32
    %c0_i32_0 = arith.constant 0 : i32
    %c0_i32_1 = arith.constant 0 : i32
    return %c0_i32, %c0_i32_0 : i32, i32
  }
  func.func @transform_4(%arg0: i32, %arg1: i32) -> (i32, i32) {
    %c0_i32 = arith.constant 0 : i32
    %c0_i32_0 = arith.constant 0 : i32
    %c0_i32_1 = arith.constant 0 : i32
    return %c0_i32, %c0_i32_0 : i32, i32
  }
  func.func @transform_5(%arg0: i32, %arg1: i32) -> (i32, i32, i32) {
    %c0_i32 = arith.constant 0 : i32
    %c0_i32_0 = arith.constant 0 : i32
    %c0_i32_1 = arith.constant 0 : i32
    return %arg0, %c0_i32, %c0_i32_0 : i32, i32, i32
  }
}

module attributes {stable_mosaic.version = 11 : i64} {
  func.func @_scale_residual_kernel(%arg0: i32, %arg1: i32, %arg2: memref<1x192x256xf32, #tpu.memory_space<vmem>>, %arg3: memref<1x192x256xf32, #tpu.memory_space<vmem>>, %arg4: memref<1x192x1xf32, #tpu.memory_space<vmem>>, %arg5: memref<1x192x256xf32, #tpu.memory_space<vmem>>) attributes {dimension_semantics = [#tpu.dimension_semantics<parallel>, #tpu.dimension_semantics<parallel>], iteration_bounds = array<i64: 2, 1>, scalar_prefetch = 0 : i64, scratch_operands = 0 : i64, tpu.core_type = #tpu.core_type<tc>, window_params = [{transform_indices = @transform_0, window_bounds = array<i64: 1, 192, 256>}, {transform_indices = @transform_1, window_bounds = array<i64: 1, 192, 256>}, {transform_indices = @transform_2, window_bounds = array<i64: 1, 192, 1>}, {transform_indices = @transform_3, window_bounds = array<i64: 1, 192, 256>}]} {
    %c0 = arith.constant 0 : index
    %c0_0 = arith.constant 0 : index
    %c0_1 = arith.constant 0 : index
    %0 = vector.load %arg2[%c0, %c0_0, %c0_1] : memref<1x192x256xf32, #tpu.memory_space<vmem>>, vector<1x192x256xf32>
    %1 = vector.shape_cast %0 : vector<1x192x256xf32> to vector<192x256xf32>
    %c0_2 = arith.constant 0 : index
    %c0_3 = arith.constant 0 : index
    %c0_4 = arith.constant 0 : index
    %2 = vector.load %arg4[%c0_2, %c0_3, %c0_4] : memref<1x192x1xf32, #tpu.memory_space<vmem>>, vector<1x192x1xf32>
    %3 = vector.shape_cast %2 : vector<1x192x1xf32> to vector<192x1xf32>
    %4 = vector.broadcast %3 : vector<192x1xf32> to vector<192x256xf32>
    %5 = arith.mulf %1, %4 : vector<192x256xf32>
    %c0_5 = arith.constant 0 : index
    %c0_6 = arith.constant 0 : index
    %c0_7 = arith.constant 0 : index
    %6 = vector.load %arg3[%c0_5, %c0_6, %c0_7] : memref<1x192x256xf32, #tpu.memory_space<vmem>>, vector<1x192x256xf32>
    %7 = vector.shape_cast %6 : vector<1x192x256xf32> to vector<192x256xf32>
    %8 = arith.addf %5, %7 : vector<192x256xf32>
    %c0_8 = arith.constant 0 : index
    %c0_9 = arith.constant 0 : index
    %c0_10 = arith.constant 0 : index
    %9 = vector.load %arg5[%c0_8, %c0_9, %c0_10] : memref<1x192x256xf32, #tpu.memory_space<vmem>>, vector<1x192x256xf32>
    %10 = vector.shape_cast %9 : vector<1x192x256xf32> to vector<192x256xf32>
    %11 = vector.shape_cast %8 : vector<192x256xf32> to vector<1x192x256xf32>
    tpu.vector_store %arg5[%c0_8, %c0_9, %c0_10], %11 {strides = array<i32>} : memref<1x192x256xf32, #tpu.memory_space<vmem>>, vector<1x192x256xf32>,
    return
  }
  func.func @transform_0(%arg0: i32, %arg1: i32) -> (i32, i32, i32) {
    %c0_i32 = arith.constant 0 : i32
    %c0_i32_0 = arith.constant 0 : i32
    return %arg0, %c0_i32, %arg1 : i32, i32, i32
  }
  func.func @transform_1(%arg0: i32, %arg1: i32) -> (i32, i32, i32) {
    %c0_i32 = arith.constant 0 : i32
    %c0_i32_0 = arith.constant 0 : i32
    return %arg0, %c0_i32, %arg1 : i32, i32, i32
  }
  func.func @transform_2(%arg0: i32, %arg1: i32) -> (i32, i32, i32) {
    %c0_i32 = arith.constant 0 : i32
    %c0_i32_0 = arith.constant 0 : i32
    %c0_i32_1 = arith.constant 0 : i32
    return %arg0, %c0_i32, %c0_i32_0 : i32, i32, i32
  }
  func.func @transform_3(%arg0: i32, %arg1: i32) -> (i32, i32, i32) {
    %c0_i32 = arith.constant 0 : i32
    %c0_i32_0 = arith.constant 0 : i32
    return %arg0, %c0_i32, %arg1 : i32, i32, i32
  }
}

</mosaic_0001>

<llo_original>
// kernel: rcab_forward.3
$region0: #{rcab_forward.3}
  #allocation0 [shape = 'u32[]', space=smem, size = 0x4, offset = 0x4, fixed_abs, tag = 'smem constant byte address 0x4 - core index']
  #allocation1 [shape = 'u32[144,128]{1,0:T(1,128)}', space=vmem, size = 0x12000, scoped, tag = 'internal scratch']
  %s0 = inlined_call_operand.vmem [shape: f32[2,192,256], index: 0, kind: input, shape index: {}, may-alias: {0,3}]
  %s1 = inlined_call_operand.vmem [shape: f32[2,192,256], index: 1, kind: input, shape index: {}]
  %s2 = inlined_call_operand.vmem [shape: f32[2,192,1], index: 2, kind: input, shape index: {}]
  %s3 = inlined_call_operand.vmem [shape: f32[2,192,256], index: 3, kind: output, shape index: {}, may-alias: {0,3}]
  %s4 = sld [smem:[#allocation0]]
  $region45: #{rcab_forward.3} parent=0
    _
  %s6 = ssub.s32 1, %s4
  %s7 = scalar_select 0, %s6, %s4
  loop: start=0, step=1, limit=4
  $region2: #{rcab_forward.3} parent=0 // loop_pre_header
    _
  $region3: #{rcab_forward.3} parent=0 // loop_header
    %s9 = sphi 0, %s13
    %p10 = scmp.ge.s32.totalorder %s9, 4
    %s16 = sphi 0, %s28
    %s17 = sphi 0, %s24
    %s18 = sphi 0, %s16
    %s19 = sphi 0, %s17
    %s20 = sphi 0, %s18
    %s21 = sphi 0, %s19
    %s33 = sphi 0, %s35
    %s36 = sphi 0, %s33
    %s37 = sphi 0, %s36
    %s53 = sphi 0, %s37
    %s61 = sphi 0, %s63
    %s64 = sphi 0, %s61
    %s65 = sphi 0, %s64
    %s81 = sphi 0, %s65
    %s87 = sphi 0, %s89
    %s90 = sphi 0, %s87
    %s91 = sphi 0, %s90
    %s107 = sphi 0, %s91
    %s115 = sphi 0, %s117
    %s118 = sphi 0, %s115
    %s119 = sphi 0, %s118
    %s135 = sphi 0, %s119
  $region4: #{rcab_forward.3} parent=0 // loop_header_branch
    %12 = sbr.rel (%p10) target = $region8
  $region5: #{rcab_forward.3} parent=0 // loop_body
    %s14 = ssub.s32 %s9, 1
    %s15 = ssub.s32 %s9, 2
    %s22 = sadd.s32 1, %s17
    %p23 = scmp.ge.s32.totalorder %s22, 1
    %s24 = scalar_select %p23, 0, %s22
    %s25 = sadd.s32 1, %s16
    %s26 = scalar_select %p23, %s25, %s16
    %p27 = scmp.ge.s32.totalorder %s26, 2
    %s28 = scalar_select %p27, 0, %s26
    %s29 = ssub.s32 %s16, %s28
    %s30 = ssub.s32 %s17, %s24
    %s31 = sor.u32 %s29, %s30
    %p32 = scmp.eq.s32.totalorder %s31, 0
    %s34 = sadd.s32 %s33, 1
    %s35 = scalar_select %p32, %s33, %s34
    %p38 = pneg %p32
    %p39 = scmp.eq.s32.totalorder %s9, 1
    %p40 = por %p38, %p39
    %p41 = scmp.ne.s32.totalorder %s33, %s36
    %p42 = scmp.eq.s32.totalorder %s9, 0
    %p43 = por %p41, %p42
    %p44 = scmp.ne.s32.totalorder %s33, %s36
    %p45 = scmp.eq.s32.totalorder %s14, 1
    %p46 = por %p44, %p45
    %p47 = scmp.ne.s32.totalorder %s36, %s37
    %p48 = scmp.eq.s32.totalorder %s14, 0
    %p49 = por %p47, %p48
    %p50 = scmp.ne.s32.totalorder %s36, %s37
    %p51 = scmp.eq.s32.totalorder %s15, 1
    %p52 = por %p50, %p51
    %p54 = scmp.ne.s32.totalorder %s37, %s53
    %p55 = scmp.eq.s32.totalorder %s15, 0
    %p56 = por %p54, %p55
    %s57 = ssub.s32 %s16, %s28
    %s58 = ssub.s32 %s17, %s24
    %s59 = sor.u32 %s57, %s58
    %p60 = scmp.eq.s32.totalorder %s59, 0
    %s62 = sadd.s32 %s61, 1
    %s63 = scalar_select %p60, %s61, %s62
    %p66 = pneg %p60
    %p67 = scmp.eq.s32.totalorder %s9, 1
    %p68 = por %p66, %p67
    %p69 = scmp.ne.s32.totalorder %s61, %s64
    %p70 = scmp.eq.s32.totalorder %s9, 0
    %p71 = por %p69, %p70
    %p72 = scmp.ne.s32.totalorder %s61, %s64
    %p73 = scmp.eq.s32.totalorder %s14, 1
    %p74 = por %p72, %p73
    %p75 = scmp.ne.s32.totalorder %s64, %s65
    %p76 = scmp.eq.s32.totalorder %s14, 0
    %p77 = por %p75, %p76
    %p78 = scmp.ne.s32.totalorder %s64, %s65
    %p79 = scmp.eq.s32.totalorder %s15, 1
    %p80 = por %p78, %p79
    %p82 = scmp.ne.s32.totalorder %s65, %s81
    %p83 = scmp.eq.s32.totalorder %s15, 0
    %p84 = por %p82, %p83
    %s85 = ssub.s32 %s16, %s28
    %p86 = scmp.eq.s32.totalorder %s85, 0
    %s88 = sadd.s32 %s87, 1
    %s89 = scalar_select %p86, %s87, %s88
    %p92 = pneg %p86
    %p93 = scmp.eq.s32.totalorder %s9, 1
    %p94 = por %p92, %p93
    %p95 = scmp.ne.s32.totalorder %s87, %s90
    %p96 = scmp.eq.s32.totalorder %s9, 0
    %p97 = por %p95, %p96
    %p98 = scmp.ne.s32.totalorder %s87, %s90
    %p99 = scmp.eq.s32.totalorder %s14, 1
    %p100 = por %p98, %p99
    %p101 = scmp.ne.s32.totalorder %s90, %s91
    %p102 = scmp.eq.s32.totalorder %s14, 0
    %p103 = por %p101, %p102
    %p104 = scmp.ne.s32.totalorder %s90, %s91
    %p105 = scmp.eq.s32.totalorder %s15, 1
    %p106 = por %p104, %p105
    %p108 = scmp.ne.s32.totalorder %s91, %s107
    %p109 = scmp.eq.s32.totalorder %s15, 0
    %p110 = por %p108, %p109
    %s111 = ssub.s32 %s16, %s28
    %s112 = ssub.s32 %s17, %s24
    %s113 = sor.u32 %s111, %s112
    %p114 = scmp.eq.s32.totalorder %s113, 0
    %s116 = sadd.s32 %s115, 1
    %s117 = scalar_select %p114, %s115, %s116
    %p120 = pneg %p114
    %p121 = scmp.eq.s32.totalorder %s9, 1
    %p122 = por %p120, %p121
    %p123 = scmp.ne.s32.totalorder %s115, %s118
    %p124 = scmp.eq.s32.totalorder %s9, 0
    %p125 = por %p123, %p124
    %p126 = scmp.ne.s32.totalorder %s115, %s118
    %p127 = scmp.eq.s32.totalorder %s14, 1
    %p128 = por %p126, %p127
    %p129 = scmp.ne.s32.totalorder %s118, %s119
    %p130 = scmp.eq.s32.totalorder %s14, 0
    %p131 = por %p129, %p130
    %p132 = scmp.ne.s32.totalorder %s118, %s119
    %p133 = scmp.eq.s32.totalorder %s15, 1
    %p134 = por %p132, %p133
    %p136 = scmp.ne.s32.totalorder %s119, %s135
    %p137 = scmp.eq.s32.totalorder %s15, 0
    %p138 = por %p136, %p137
    %p139 = scmp.le.s32.totalorder 1, %s9
    %p140 = scmp.lt.s32.totalorder %s9, 3
    %p141 = pnand %p139, %p140
    %p142 = pneg %p141
    // Predicated region
    $region9: #{rcab_forward.3} parent=5 // pred_check
      _
    $region10: #{rcab_forward.3} parent=5 // pred_check_branch
      %144 = sbr.rel (%p141) target = $region12
    $region11: #{rcab_forward.3} parent=5 // pred_region
      %s145 = ssub.s32 %s9, 1
    $region12: #{rcab_forward.3} parent=5 // pred_fallthru
      _
    %p146 = scmp.lt.s32.totalorder %s9, 2
    // Predicated region
    $region13: #{rcab_forward.3} parent=5 // pred_check
      %p147 = pneg %p146
    $region14: #{rcab_forward.3} parent=5 // pred_check_branch
      %149 = sbr.rel (%p147) target = $region16
    $region15: #{rcab_forward.3} parent=5 // pred_region
      // Predicated region
      $region17: #{rcab_forward.3} parent=15 // pred_check
        %p150 = pneg %p43
      $region18: #{rcab_forward.3} parent=15 // pred_check_branch
        %152 = sbr.rel (%p150) target = $region20
      $region19: #{rcab_forward.3} parent=15 // pred_region
        %s153 = smul.u32 2, %s17
        %p154 = scmp.lt.s32.totalorder %s16, 1
        %s155 = scalar_select %p154, %s16, 1
        %p156 = scmp.lt.s32.totalorder %s153, 1
        %s157 = scalar_select %p156, %s153, 1
        %s158 = smul.addr %s155, 48
        %s159 = sadd.s32 %s157, %s158
        %s160 = smul.addr %s159, 8
        %s161 = scalar_lea.vmem %s0, %s160
        %s162 = smul.u32 2, %s17
      $region20: #{rcab_forward.3} parent=15 // pred_fallthru
        _
      // Predicated region
      $region21: #{rcab_forward.3} parent=15 // pred_check
        %p163 = pneg %p71
      $region22: #{rcab_forward.3} parent=15 // pred_check_branch
        %165 = sbr.rel (%p163) target = $region24
      $region23: #{rcab_forward.3} parent=15 // pred_region
        %s166 = smul.u32 2, %s17
        %p167 = scmp.lt.s32.totalorder %s16, 1
        %s168 = scalar_select %p167, %s16, 1
        %p169 = scmp.lt.s32.totalorder %s166, 1
        %s170 = scalar_select %p169, %s166, 1
        %s171 = smul.addr %s168, 48
        %s172 = sadd.s32 %s170, %s171
        %s173 = smul.addr %s172, 8
        %s174 = scalar_lea.vmem %s1, %s173
        %s175 = smul.u32 2, %s17
      $region24: #{rcab_forward.3} parent=15 // pred_fallthru
        _
      // Predicated region
      $region25: #{rcab_forward.3} parent=15 // pred_check
        %p176 = pneg %p97
      $region26: #{rcab_forward.3} parent=15 // pred_check_branch
        %178 = sbr.rel (%p176) target = $region28
      $region27: #{rcab_forward.3} parent=15 // pred_region
        %p179 = scmp.lt.s32.totalorder %s16, 1
        %s180 = scalar_select %p179, %s16, 1
        %s181 = smul.addr %s180, 24
        %s182 = smul.addr %s181, 8
        %s183 = scalar_lea.vmem %s2, %s182
      $region28: #{rcab_forward.3} parent=15 // pred_fallthru
        _
    $region16: #{rcab_forward.3} parent=5 // pred_fallthru
      _
    %p184 = scmp.le.s32.totalorder 1, %s9
    %p185 = scmp.lt.s32.totalorder %s9, 3
    %p186 = pnand %p184, %p185
    %p187 = pneg %p186
    // Predicated region
    $region29: #{rcab_forward.3} parent=5 // pred_check
      _
    $region30: #{rcab_forward.3} parent=5 // pred_check_branch
      %189 = sbr.rel (%p186) target = $region32
    $region31: #{rcab_forward.3} parent=5 // pred_region
      %s190 = ssub.s32 %s9, 1
      %s191 = smul.u32 2, %s19
      %p192 = scmp.lt.s32.totalorder %s18, 1
      %s193 = scalar_select %p192, %s18, 1
      %p194 = scmp.lt.s32.totalorder %s191, 1
      %s195 = scalar_select %p194, %s191, 1
      %s196 = smul.addr %s193, 48
      %s197 = sadd.s32 %s195, %s196
      %s198 = smul.addr %s197, 8
      %s199 = scalar_lea.vmem %s0, %s198
      %p200 = pneg %p49
      %p201 = pneg %p46
      %s202 = smul.u32 2, %s19
      %p203 = scmp.lt.s32.totalorder %s18, 1
      %s204 = scalar_select %p203, %s18, 1
      %p205 = scmp.lt.s32.totalorder %s202, 1
      %s206 = scalar_select %p205, %s202, 1
      %s207 = smul.addr %s204, 48
      %s208 = sadd.s32 %s206, %s207
      %s209 = smul.addr %s208, 8
      %s210 = scalar_lea.vmem %s1, %s209
      %p211 = pneg %p77
      %p212 = pneg %p74
      %p213 = scmp.lt.s32.totalorder %s18, 1
      %s214 = scalar_select %p213, %s18, 1
      %s215 = smul.addr %s214, 24
      %s216 = smul.addr %s215, 8
      %s217 = scalar_lea.vmem %s2, %s216
      %p218 = pneg %p103
      %p219 = pneg %p100
      %p220 = pneg %p131
      %p221 = pneg %p128
      %s222 = smul.u32 2, %s19
      %p223 = scmp.lt.s32.totalorder %s18, 1
      %s224 = scalar_select %p223, %s18, 1
      %p225 = scmp.lt.s32.totalorder %s222, 1
      %s226 = scalar_select %p225, %s222, 1
      %s227 = smul.addr %s224, 48
      %s228 = sadd.s32 %s226, %s227
      %s229 = smul.addr %s228, 8
      %s230 = scalar_lea.vmem %s3, %s229
      %s231 = smul.u32 2, %s19
      %p232 = scmp.lt.s32.totalorder %s18, 1
      %s233 = scalar_select %p232, %s18, 1
      %p234 = scmp.lt.s32.totalorder %s231, 1
      %s235 = scalar_select %p234, %s231, 1
      %s236 = smul.addr %s233, 48
      %s237 = sadd.s32 %s235, %s236
      %s238 = smul.addr %s237, 8
      %s239 = scalar_lea.vmem %s0, %s238
      %s240 = smul.u32 2, %s19
      %s241 = smul.u32 2, %s19
      %p242 = scmp.lt.s32.totalorder %s18, 1
      %s243 = scalar_select %p242, %s18, 1
      %p244 = scmp.lt.s32.totalorder %s241, 1
      %s245 = scalar_select %p244, %s241, 1
      %s246 = smul.addr %s243, 48
      %s247 = sadd.s32 %s245, %s246
      %s248 = smul.addr %s247, 8
      %s249 = scalar_lea.vmem %s1, %s248
      %s250 = smul.u32 2, %s19
      %p251 = scmp.lt.s32.totalorder %s18, 1
      %s252 = scalar_select %p251, %s18, 1
      %s253 = smul.addr %s252, 24
      %s254 = smul.addr %s253, 8
      %s255 = scalar_lea.vmem %s2, %s254
      %s256 = smul.u32 2, %s19
      %p257 = scmp.lt.s32.totalorder %s18, 1
      %s258 = scalar_select %p257, %s18, 1
      %p259 = scmp.lt.s32.totalorder %s256, 1
      %s260 = scalar_select %p259, %s256, 1
      %s261 = smul.addr %s258, 48
      %s262 = sadd.s32 %s260, %s261
      %s263 = smul.addr %s262, 8
      %s264 = scalar_lea.vmem %s3, %s263
      %s265 = smul.u32 2, %s19
      %v266 = vld [vmem:[%s239] sm:$0xff]
      %v267 = vld [vmem:[%s239 + $0x8] sm:$0xff]
      %v268 = vld [vmem:[%s239 + $0x10] sm:$0xff]
      %v269 = vld [vmem:[%s239 + $0x18] sm:$0xff]
      %v270 = vld [vmem:[%s239 + $0x20] sm:$0xff]
      %v271 = vld [vmem:[%s239 + $0x28] sm:$0xff]
      %v272 = vld [vmem:[%s239 + $0x30] sm:$0xff]
      %v273 = vld [vmem:[%s239 + $0x38] sm:$0xff]
      %v274 = vld [vmem:[%s239 + $0x40] sm:$0xff]
      %v275 = vld [vmem:[%s239 + $0x48] sm:$0xff]
      %v276 = vld [vmem:[%s239 + $0x50] sm:$0xff]
      %v277 = vld [vmem:[%s239 + $0x58] sm:$0xff]
      %v278 = vld [vmem:[%s239 + $0x60] sm:$0xff]
      %v279 = vld [vmem:[%s239 + $0x68] sm:$0xff]
      %v280 = vld [vmem:[%s239 + $0x70] sm:$0xff]
      %v281 = vld [vmem:[%s239 + $0x78] sm:$0xff]
      %v282 = vld [vmem:[%s239 + $0x80] sm:$0xff]
      %v283 = vld [vmem:[%s239 + $0x88] sm:$0xff]
      %v284 = vld [vmem:[%s239 + $0x90] sm:$0xff]
      %v285 = vld [vmem:[%s239 + $0x98] sm:$0xff]
      %v286 = vld [vmem:[%s239 + $0xa0] sm:$0xff]
      %v287 = vld [vmem:[%s239 + $0xa8] sm:$0xff]
      %v288 = vld [vmem:[%s239 + $0xb0] sm:$0xff]
      %v289 = vld [vmem:[%s239 + $0xb8] sm:$0xff]
      %v290 = vld [vmem:[%s239 + $0xc0] sm:$0xff]
      %v291 = vld [vmem:[%s239 + $0xc8] sm:$0xff]
      %v292 = vld [vmem:[%s239 + $0xd0] sm:$0xff]
      %v293 = vld [vmem:[%s239 + $0xd8] sm:$0xff]
      %v294 = vld [vmem:[%s239 + $0xe0] sm:$0xff]
      %v295 = vld [vmem:[%s239 + $0xe8] sm:$0xff]
      %v296 = vld [vmem:[%s239 + $0xf0] sm:$0xff]
      %v297 = vld [vmem:[%s239 + $0xf8] sm:$0xff]
      %v298 = vld [vmem:[%s239 + $0x100] sm:$0xff]
      %v299 = vld [vmem:[%s239 + $0x108] sm:$0xff]
      %v300 = vld [vmem:[%s239 + $0x110] sm:$0xff]
      %v301 = vld [vmem:[%s239 + $0x118] sm:$0xff]
      %v302 = vld [vmem:[%s239 + $0x120] sm:$0xff]
      %v303 = vld [vmem:[%s239 + $0x128] sm:$0xff]
      %v304 = vld [vmem:[%s239 + $0x130] sm:$0xff]
      %v305 = vld [vmem:[%s239 + $0x138] sm:$0xff]
      %v306 = vld [vmem:[%s239 + $0x140] sm:$0xff]
      %v307 = vld [vmem:[%s239 + $0x148] sm:$0xff]
      %v308 = vld [vmem:[%s239 + $0x150] sm:$0xff]
      %v309 = vld [vmem:[%s239 + $0x158] sm:$0xff]
      %v310 = vld [vmem:[%s239 + $0x160] sm:$0xff]
      %v311 = vld [vmem:[%s239 + $0x168] sm:$0xff]
      %v312 = vld [vmem:[%s239 + $0x170] sm:$0xff]
      %v313 = vld [vmem:[%s239 + $0x178] sm:$0xff]
      %v314 = vld [vmem:[%s255] sm:$0xff]
      %v315 = vld [vmem:[%s255 + $0x8] sm:$0xff]
      %v316 = vld [vmem:[%s255 + $0x10] sm:$0xff]
      %v317 = vld [vmem:[%s255 + $0x18] sm:$0xff]
      %v318 = vld [vmem:[%s255 + $0x20] sm:$0xff]
      %v319 = vld [vmem:[%s255 + $0x28] sm:$0xff]
      %v320 = vld [vmem:[%s255 + $0x30] sm:$0xff]
      %v321 = vld [vmem:[%s255 + $0x38] sm:$0xff]
      %v322 = vld [vmem:[%s255 + $0x40] sm:$0xff]
      %v323 = vld [vmem:[%s255 + $0x48] sm:$0xff]
      %v324 = vld [vmem:[%s255 + $0x50] sm:$0xff]
      %v325 = vld [vmem:[%s255 + $0x58] sm:$0xff]
      %v326 = vld [vmem:[%s255 + $0x60] sm:$0xff]
      %v327 = vld [vmem:[%s255 + $0x68] sm:$0xff]
      %v328 = vld [vmem:[%s255 + $0x70] sm:$0xff]
      %v329 = vld [vmem:[%s255 + $0x78] sm:$0xff]
      %v330 = vld [vmem:[%s255 + $0x80] sm:$0xff]
      %v331 = vld [vmem:[%s255 + $0x88] sm:$0xff]
      %v332 = vld [vmem:[%s255 + $0x90] sm:$0xff]
      %v333 = vld [vmem:[%s255 + $0x98] sm:$0xff]
      %v334 = vld [vmem:[%s255 + $0xa0] sm:$0xff]
      %v335 = vld [vmem:[%s255 + $0xa8] sm:$0xff]
      %v336 = vld [vmem:[%s255 + $0xb0] sm:$0xff]
      %v337 = vld [vmem:[%s255 + $0xb8] sm:$0xff]
      %339 = vset.pattern.permute.xlu0 0
      %340 = vperm.xlu0 %339, %v314
      %v341 = vpop.permute.xlu0 %340
      %344 = vset.pattern.permute.xlu0 0
      %345 = vperm.xlu0 %344, %v315
      %v346 = vpop.permute.xlu0 %345
      %349 = vset.pattern.permute.xlu0 0
      %350 = vperm.xlu0 %349, %v316
      %v351 = vpop.permute.xlu0 %350
      %354 = vset.pattern.permute.xlu0 0
      %355 = vperm.xlu0 %354, %v317
      %v356 = vpop.permute.xlu0 %355
      %359 = vset.pattern.permute.xlu0 0
      %360 = vperm.xlu0 %359, %v318
      %v361 = vpop.permute.xlu0 %360
      %364 = vset.pattern.permute.xlu0 0
      %365 = vperm.xlu0 %364, %v319
      %v366 = vpop.permute.xlu0 %365
      %369 = vset.pattern.permute.xlu0 0
      %370 = vperm.xlu0 %369, %v320
      %v371 = vpop.permute.xlu0 %370
      %374 = vset.pattern.permute.xlu0 0
      %375 = vperm.xlu0 %374, %v321
      %v376 = vpop.permute.xlu0 %375
      %379 = vset.pattern.permute.xlu0 0
      %380 = vperm.xlu0 %379, %v322
      %v381 = vpop.permute.xlu0 %380
      %384 = vset.pattern.permute.xlu0 0
      %385 = vperm.xlu0 %384, %v323
      %v386 = vpop.permute.xlu0 %385
      %389 = vset.pattern.permute.xlu0 0
      %390 = vperm.xlu0 %389, %v324
      %v391 = vpop.permute.xlu0 %390
      %394 = vset.pattern.permute.xlu0 0
      %395 = vperm.xlu0 %394, %v325
      %v396 = vpop.permute.xlu0 %395
      %399 = vset.pattern.permute.xlu0 0
      %400 = vperm.xlu0 %399, %v326
      %v401 = vpop.permute.xlu0 %400
      %404 = vset.pattern.permute.xlu0 0
      %405 = vperm.xlu0 %404, %v327
      %v406 = vpop.permute.xlu0 %405
      %409 = vset.pattern.permute.xlu0 0
      %410 = vperm.xlu0 %409, %v328
      %v411 = vpop.permute.xlu0 %410
      %414 = vset.pattern.permute.xlu0 0
      %415 = vperm.xlu0 %414, %v329
      %v416 = vpop.permute.xlu0 %415
      %419 = vset.pattern.permute.xlu0 0
      %420 = vperm.xlu0 %419, %v330
      %v421 = vpop.permute.xlu0 %420
      %424 = vset.pattern.permute.xlu0 0
      %425 = vperm.xlu0 %424, %v331
      %v426 = vpop.permute.xlu0 %425
      %429 = vset.pattern.permute.xlu0 0
      %430 = vperm.xlu0 %429, %v332
      %v431 = vpop.permute.xlu0 %430
      %434 = vset.pattern.permute.xlu0 0
      %435 = vperm.xlu0 %434, %v333
      %v436 = vpop.permute.xlu0 %435
      %439 = vset.pattern.permute.xlu0 0
      %440 = vperm.xlu0 %439, %v334
      %v441 = vpop.permute.xlu0 %440
      %444 = vset.pattern.permute.xlu0 0
      %445 = vperm.xlu0 %444, %v335
      %v446 = vpop.permute.xlu0 %445
      %449 = vset.pattern.permute.xlu0 0
      %450 = vperm.xlu0 %449, %v336
      %v451 = vpop.permute.xlu0 %450
      %454 = vset.pattern.permute.xlu0 0
      %455 = vperm.xlu0 %454, %v337
      %v456 = vpop.permute.xlu0 %455
      %v458 = vmul.f32 %v266, %v341
      %v459 = vmul.f32 %v267, %v341
      %v460 = vmul.f32 %v268, %v346
      %v461 = vmul.f32 %v269, %v346
      %v462 = vmul.f32 %v270, %v351
      %v463 = vmul.f32 %v271, %v351
      %v464 = vmul.f32 %v272, %v356
      %v465 = vmul.f32 %v273, %v356
      %v466 = vmul.f32 %v274, %v361
      %v467 = vmul.f32 %v275, %v361
      %v468 = vmul.f32 %v276, %v366
      %v469 = vmul.f32 %v277, %v366
      %v470 = vmul.f32 %v278, %v371
      %v471 = vmul.f32 %v279, %v371
      %v472 = vmul.f32 %v280, %v376
      %v473 = vmul.f32 %v281, %v376
      %v474 = vmul.f32 %v282, %v381
      %v475 = vmul.f32 %v283, %v381
      %v476 = vmul.f32 %v284, %v386
      %v477 = vmul.f32 %v285, %v386
      %v478 = vmul.f32 %v286, %v391
      %v479 = vmul.f32 %v287, %v391
      %v480 = vmul.f32 %v288, %v396
      %v481 = vmul.f32 %v289, %v396
      %v482 = vmul.f32 %v290, %v401
      %v483 = vmul.f32 %v291, %v401
      %v484 = vmul.f32 %v292, %v406
      %v485 = vmul.f32 %v293, %v406
      %v486 = vmul.f32 %v294, %v411
      %v487 = vmul.f32 %v295, %v411
      %v488 = vmul.f32 %v296, %v416
      %v489 = vmul.f32 %v297, %v416
      %v490 = vmul.f32 %v298, %v421
      %v491 = vmul.f32 %v299, %v421
      %v492 = vmul.f32 %v300, %v426
      %v493 = vmul.f32 %v301, %v426
      %v494 = vmul.f32 %v302, %v431
      %v495 = vmul.f32 %v303, %v431
      %v496 = vmul.f32 %v304, %v436
      %v497 = vmul.f32 %v305, %v436
      %v498 = vmul.f32 %v306, %v441
      %v499 = vmul.f32 %v307, %v441
      %v500 = vmul.f32 %v308, %v446
      %v501 = vmul.f32 %v309, %v446
      %v502 = vmul.f32 %v310, %v451
      %v503 = vmul.f32 %v311, %v451
      %v504 = vmul.f32 %v312, %v456
      %v505 = vmul.f32 %v313, %v456
      %v506 = vld [vmem:[%s249] sm:$0xff]
      %v507 = vld [vmem:[%s249 + $0x8] sm:$0xff]
      %v508 = vld [vmem:[%s249 + $0x10] sm:$0xff]
      %v509 = vld [vmem:[%s249 + $0x18] sm:$0xff]
      %v510 = vld [vmem:[%s249 + $0x20] sm:$0xff]
      %v511 = vld [vmem:[%s249 + $0x28] sm:$0xff]
      %v512 = vld [vmem:[%s249 + $0x30] sm:$0xff]
      %v513 = vld [vmem:[%s249 + $0x38] sm:$0xff]
      %v514 = vld [vmem:[%s249 + $0x40] sm:$0xff]
      %v515 = vld [vmem:[%s249 + $0x48] sm:$0xff]
      %v516 = vld [vmem:[%s249 + $0x50] sm:$0xff]
      %v517 = vld [vmem:[%s249 + $0x58] sm:$0xff]
      %v518 = vld [vmem:[%s249 + $0x60] sm:$0xff]
      %v519 = vld [vmem:[%s249 + $0x68] sm:$0xff]
      %v520 = vld [vmem:[%s249 + $0x70] sm:$0xff]
      %v521 = vld [vmem:[%s249 + $0x78] sm:$0xff]
      %v522 = vld [vmem:[%s249 + $0x80] sm:$0xff]
      %v523 = vld [vmem:[%s249 + $0x88] sm:$0xff]
      %v524 = vld [vmem:[%s249 + $0x90] sm:$0xff]
      %v525 = vld [vmem:[%s249 + $0x98] sm:$0xff]
      %v526 = vld [vmem:[%s249 + $0xa0] sm:$0xff]
      %v527 = vld [vmem:[%s249 + $0xa8] sm:$0xff]
      %v528 = vld [vmem:[%s249 + $0xb0] sm:$0xff]
      %v529 = vld [vmem:[%s249 + $0xb8] sm:$0xff]
      %v530 = vld [vmem:[%s249 + $0xc0] sm:$0xff]
      %v531 = vld [vmem:[%s249 + $0xc8] sm:$0xff]
      %v532 = vld [vmem:[%s249 + $0xd0] sm:$0xff]
      %v533 = vld [vmem:[%s249 + $0xd8] sm:$0xff]
      %v534 = vld [vmem:[%s249 + $0xe0] sm:$0xff]
      %v535 = vld [vmem:[%s249 + $0xe8] sm:$0xff]
      %v536 = vld [vmem:[%s249 + $0xf0] sm:$0xff]
      %v537 = vld [vmem:[%s249 + $0xf8] sm:$0xff]
      %v538 = vld [vmem:[%s249 + $0x100] sm:$0xff]
      %v539 = vld [vmem:[%s249 + $0x108] sm:$0xff]
      %v540 = vld [vmem:[%s249 + $0x110] sm:$0xff]
      %v541 = vld [vmem:[%s249 + $0x118] sm:$0xff]
      %v542 = vld [vmem:[%s249 + $0x120] sm:$0xff]
      %v543 = vld [vmem:[%s249 + $0x128] sm:$0xff]
      %v544 = vld [vmem:[%s249 + $0x130] sm:$0xff]
      %v545 = vld [vmem:[%s249 + $0x138] sm:$0xff]
      %v546 = vld [vmem:[%s249 + $0x140] sm:$0xff]
      %v547 = vld [vmem:[%s249 + $0x148] sm:$0xff]
      %v548 = vld [vmem:[%s249 + $0x150] sm:$0xff]
      %v549 = vld [vmem:[%s249 + $0x158] sm:$0xff]
      %v550 = vld [vmem:[%s249 + $0x160] sm:$0xff]
      %v551 = vld [vmem:[%s249 + $0x168] sm:$0xff]
      %v552 = vld [vmem:[%s249 + $0x170] sm:$0xff]
      %v553 = vld [vmem:[%s249 + $0x178] sm:$0xff]
      %v554 = vadd.f32 %v458, %v506
      %v555 = vadd.f32 %v459, %v507
      %v556 = vadd.f32 %v460, %v508
      %v557 = vadd.f32 %v461, %v509
      %v558 = vadd.f32 %v462, %v510
      %v559 = vadd.f32 %v463, %v511
      %v560 = vadd.f32 %v464, %v512
      %v561 = vadd.f32 %v465, %v513
      %v562 = vadd.f32 %v466, %v514
      %v563 = vadd.f32 %v467, %v515
      %v564 = vadd.f32 %v468, %v516
      %v565 = vadd.f32 %v469, %v517
      %v566 = vadd.f32 %v470, %v518
      %v567 = vadd.f32 %v471, %v519
      %v568 = vadd.f32 %v472, %v520
      %v569 = vadd.f32 %v473, %v521
      %v570 = vadd.f32 %v474, %v522
      %v571 = vadd.f32 %v475, %v523
      %v572 = vadd.f32 %v476, %v524
      %v573 = vadd.f32 %v477, %v525
      %v574 = vadd.f32 %v478, %v526
      %v575 = vadd.f32 %v479, %v527
      %v576 = vadd.f32 %v480, %v528
      %v577 = vadd.f32 %v481, %v529
      %v578 = vadd.f32 %v482, %v530
      %v579 = vadd.f32 %v483, %v531
      %v580 = vadd.f32 %v484, %v532
      %v581 = vadd.f32 %v485, %v533
      %v582 = vadd.f32 %v486, %v534
      %v583 = vadd.f32 %v487, %v535
      %v584 = vadd.f32 %v488, %v536
      %v585 = vadd.f32 %v489, %v537
      %v586 = vadd.f32 %v490, %v538
      %v587 = vadd.f32 %v491, %v539
      %v588 = vadd.f32 %v492, %v540
      %v589 = vadd.f32 %v493, %v541
      %v590 = vadd.f32 %v494, %v542
      %v591 = vadd.f32 %v495, %v543
      %v592 = vadd.f32 %v496, %v544
      %v593 = vadd.f32 %v497, %v545
      %v594 = vadd.f32 %v498, %v546
      %v595 = vadd.f32 %v499, %v547
      %v596 = vadd.f32 %v500, %v548
      %v597 = vadd.f32 %v501, %v549
      %v598 = vadd.f32 %v502, %v550
      %v599 = vadd.f32 %v503, %v551
      %v600 = vadd.f32 %v504, %v552
      %v601 = vadd.f32 %v505, %v553
      %602 = vst [vmem:[%s264] sm:$0xff] %v554
      %603 = vst [vmem:[%s264 + $0x8] sm:$0xff] %v555
      %604 = vst [vmem:[%s264 + $0x10] sm:$0xff] %v556
      %605 = vst [vmem:[%s264 + $0x18] sm:$0xff] %v557
      %606 = vst [vmem:[%s264 + $0x20] sm:$0xff] %v558
      %607 = vst [vmem:[%s264 + $0x28] sm:$0xff] %v559
      %608 = vst [vmem:[%s264 + $0x30] sm:$0xff] %v560
      %609 = vst [vmem:[%s264 + $0x38] sm:$0xff] %v561
      %610 = vst [vmem:[%s264 + $0x40] sm:$0xff] %v562
      %611 = vst [vmem:[%s264 + $0x48] sm:$0xff] %v563
      %612 = vst [vmem:[%s264 + $0x50] sm:$0xff] %v564
      %613 = vst [vmem:[%s264 + $0x58] sm:$0xff] %v565
      %614 = vst [vmem:[%s264 + $0x60] sm:$0xff] %v566
      %615 = vst [vmem:[%s264 + $0x68] sm:$0xff] %v567
      %616 = vst [vmem:[%s264 + $0x70] sm:$0xff] %v568
      %617 = vst [vmem:[%s264 + $0x78] sm:$0xff] %v569
      %618 = vst [vmem:[%s264 + $0x80] sm:$0xff] %v570
      %619 = vst [vmem:[%s264 + $0x88] sm:$0xff] %v571
      %620 = vst [vmem:[%s264 + $0x90] sm:$0xff] %v572
      %621 = vst [vmem:[%s264 + $0x98] sm:$0xff] %v573
      %622 = vst [vmem:[%s264 + $0xa0] sm:$0xff] %v574
      %623 = vst [vmem:[%s264 + $0xa8] sm:$0xff] %v575
      %624 = vst [vmem:[%s264 + $0xb0] sm:$0xff] %v576
      %625 = vst [vmem:[%s264 + $0xb8] sm:$0xff] %v577
      %626 = vst [vmem:[%s264 + $0xc0] sm:$0xff] %v578
      %627 = vst [vmem:[%s264 + $0xc8] sm:$0xff] %v579
      %628 = vst [vmem:[%s264 + $0xd0] sm:$0xff] %v580
      %629 = vst [vmem:[%s264 + $0xd8] sm:$0xff] %v581
      %630 = vst [vmem:[%s264 + $0xe0] sm:$0xff] %v582
      %631 = vst [vmem:[%s264 + $0xe8] sm:$0xff] %v583
      %632 = vst [vmem:[%s264 + $0xf0] sm:$0xff] %v584
      %633 = vst [vmem:[%s264 + $0xf8] sm:$0xff] %v585
      %634 = vst [vmem:[%s264 + $0x100] sm:$0xff] %v586
      %635 = vst [vmem:[%s264 + $0x108] sm:$0xff] %v587
      %636 = vst [vmem:[%s264 + $0x110] sm:$0xff] %v588
      %637 = vst [vmem:[%s264 + $0x118] sm:$0xff] %v589
      %638 = vst [vmem:[%s264 + $0x120] sm:$0xff] %v590
      %639 = vst [vmem:[%s264 + $0x128] sm:$0xff] %v591
      %640 = vst [vmem:[%s264 + $0x130] sm:$0xff] %v592
      %641 = vst [vmem:[%s264 + $0x138] sm:$0xff] %v593
      %642 = vst [vmem:[%s264 + $0x140] sm:$0xff] %v594
      %643 = vst [vmem:[%s264 + $0x148] sm:$0xff] %v595
      %644 = vst [vmem:[%s264 + $0x150] sm:$0xff] %v596
      %645 = vst [vmem:[%s264 + $0x158] sm:$0xff] %v597
      %646 = vst [vmem:[%s264 + $0x160] sm:$0xff] %v598
      %647 = vst [vmem:[%s264 + $0x168] sm:$0xff] %v599
      %648 = vst [vmem:[%s264 + $0x170] sm:$0xff] %v600
      %649 = vst [vmem:[%s264 + $0x178] sm:$0xff] %v601
      %s650 = smul.u32 2, %s19
      %p651 = scmp.lt.s32.totalorder %s18, 1
      %s652 = scalar_select %p651, %s18, 1
      %p653 = scmp.lt.s32.totalorder %s650, 1
      %s654 = scalar_select %p653, %s650, 1
      %s655 = smul.addr %s652, 48
      %s656 = sadd.s32 %s654, %s655
      %s657 = smul.addr %s656, 8
      %s658 = scalar_lea.vmem %s3, %s657
      // Predicated region
      $region33: #{rcab_forward.3} parent=31 // pred_check
        %p659 = pneg %p128
      $region34: #{rcab_forward.3} parent=31 // pred_check_branch
        %661 = sbr.rel (%p659) target = $region36
      $region35: #{rcab_forward.3} parent=31 // pred_region
        %s662 = smul.u32 2, %s19
      $region36: #{rcab_forward.3} parent=31 // pred_fallthru
        _
    $region32: #{rcab_forward.3} parent=5 // pred_fallthru
      _
    %p663 = scmp.le.s32.totalorder 2, %s9
    // Predicated region
    $region37: #{rcab_forward.3} parent=5 // pred_check
      %p664 = pneg %p663
    $region38: #{rcab_forward.3} parent=5 // pred_check_branch
      %666 = sbr.rel (%p664) target = $region40
    $region39: #{rcab_forward.3} parent=5 // pred_region
      %s667 = ssub.s32 %s9, 2
      // Predicated region
      $region41: #{rcab_forward.3} parent=39 // pred_check
        %p668 = pneg %p134
      $region42: #{rcab_forward.3} parent=39 // pred_check_branch
        %670 = sbr.rel (%p668) target = $region44
      $region43: #{rcab_forward.3} parent=39 // pred_region
        %s671 = smul.u32 2, %s21
        %p672 = scmp.lt.s32.totalorder %s20, 1
        %s673 = scalar_select %p672, %s20, 1
        %p674 = scmp.lt.s32.totalorder %s671, 1
        %s675 = scalar_select %p674, %s671, 1
        %s676 = smul.addr %s673, 48
        %s677 = sadd.s32 %s675, %s676
        %s678 = smul.addr %s677, 8
        %s679 = scalar_lea.vmem %s3, %s678
      $region44: #{rcab_forward.3} parent=39 // pred_fallthru
        _
    $region40: #{rcab_forward.3} parent=5 // pred_fallthru
      _
  $region6: #{rcab_forward.3} parent=0 // loop_footer
    %s13 = sadd.s32 1, %s9
  $region7: #{rcab_forward.3} parent=0 // loop_footer_branch
    %8 = sbr.rel target = $region3
  $region8: #{rcab_forward.3} parent=0 // loop_exit
    _

// kernel: rcab_forward.2
$region0: #{rcab_forward.2}
  #allocation0 [shape = 'u32[]', space=smem, size = 0x4, offset = 0x4, fixed_abs, tag = 'smem constant byte address 0x4 - core index']
  #allocation1 [shape = 'u32[144,128]{1,0:T(1,128)}', space=vmem, size = 0x12000, scoped, tag = 'internal scratch']
  #allocation2 [shape = 'f32[192,1]{1,0:T(8,128)}', space=vmem, size = 0x18000, scoped, tag = 'scratch operand']
  %s0 = inlined_call_operand.vmem [shape: f32[2,192,256], index: 0, kind: input, shape index: {}]
  %s1 = inlined_call_operand.vmem [shape: f32[12,192], index: 1, kind: input, shape index: {}]
  %s2 = inlined_call_operand.vmem [shape: f32[12,1], index: 2, kind: input, shape index: {}]
  %s3 = inlined_call_operand.vmem [shape: f32[192,12], index: 3, kind: input, shape index: {}]
  %s4 = inlined_call_operand.vmem [shape: f32[192,1], index: 4, kind: input, shape index: {}]
  %s5 = inlined_call_operand.vmem [shape: f32[2,192,1], index: 5, kind: output, shape index: {}]
  %s6 = sld [smem:[#allocation0]]
  $region61: #{rcab_forward.2} parent=0
    _
  %s8 = ssub.s32 1, %s6
  %s9 = scalar_select 0, %s8, %s6
  loop: start=0, step=1, limit=4
  $region2: #{rcab_forward.2} parent=0 // loop_pre_header
    _
  $region3: #{rcab_forward.2} parent=0 // loop_header
    %s11 = sphi 0, %s15
    %p12 = scmp.ge.s32.totalorder %s11, 4
    %s18 = sphi 0, %s30
    %s19 = sphi 0, %s26
    %s20 = sphi 0, %s18
    %s21 = sphi 0, %s19
    %s22 = sphi 0, %s20
    %s23 = sphi 0, %s21
    %s35 = sphi 0, %s37
    %s38 = sphi 0, %s35
    %s39 = sphi 0, %s38
    %s55 = sphi 0, %s39
    %s59 = sphi 0, %s59
    %s61 = sphi 0, %s59
    %s62 = sphi 0, %s61
    %s76 = sphi 0, %s62
    %s80 = sphi 0, %s80
    %s82 = sphi 0, %s80
    %s83 = sphi 0, %s82
    %s97 = sphi 0, %s83
    %s101 = sphi 0, %s101
    %s103 = sphi 0, %s101
    %s104 = sphi 0, %s103
    %s118 = sphi 0, %s104
    %s122 = sphi 0, %s122
    %s124 = sphi 0, %s122
    %s125 = sphi 0, %s124
    %s139 = sphi 0, %s125
    %s145 = sphi 0, %s147
    %s148 = sphi 0, %s145
    %s149 = sphi 0, %s148
    %s165 = sphi 0, %s149
  $region4: #{rcab_forward.2} parent=0 // loop_header_branch
    %14 = sbr.rel (%p12) target = $region8
  $region5: #{rcab_forward.2} parent=0 // loop_body
    %s16 = ssub.s32 %s11, 1
    %s17 = ssub.s32 %s11, 2
    %s24 = sadd.s32 1, %s19
    %p25 = scmp.ge.s32.totalorder %s24, 1
    %s26 = scalar_select %p25, 0, %s24
    %s27 = sadd.s32 1, %s18
    %s28 = scalar_select %p25, %s27, %s18
    %p29 = scmp.ge.s32.totalorder %s28, 2
    %s30 = scalar_select %p29, 0, %s28
    %s31 = ssub.s32 %s18, %s30
    %s32 = ssub.s32 %s19, %s26
    %s33 = sor.u32 %s31, %s32
    %p34 = scmp.eq.s32.totalorder %s33, 0
    %s36 = sadd.s32 %s35, 1
    %s37 = scalar_select %p34, %s35, %s36
    %p40 = pneg %p34
    %p41 = scmp.eq.s32.totalorder %s11, 1
    %p42 = por %p40, %p41
    %p43 = scmp.ne.s32.totalorder %s35, %s38
    %p44 = scmp.eq.s32.totalorder %s11, 0
    %p45 = por %p43, %p44
    %p46 = scmp.ne.s32.totalorder %s35, %s38
    %p47 = scmp.eq.s32.totalorder %s16, 1
    %p48 = por %p46, %p47
    %p49 = scmp.ne.s32.totalorder %s38, %s39
    %p50 = scmp.eq.s32.totalorder %s16, 0
    %p51 = por %p49, %p50
    %p52 = scmp.ne.s32.totalorder %s38, %s39
    %p53 = scmp.eq.s32.totalorder %s17, 1
    %p54 = por %p52, %p53
    %p56 = scmp.ne.s32.totalorder %s39, %s55
    %p57 = scmp.eq.s32.totalorder %s17, 0
    %p58 = por %p56, %p57
    %s60 = sadd.s32 %s59, 1
    %p63 = scmp.eq.s32.totalorder %s11, 1
    %p64 = scmp.ne.s32.totalorder %s59, %s61
    %p65 = scmp.eq.s32.totalorder %s11, 0
    %p66 = por %p64, %p65
    %p67 = scmp.ne.s32.totalorder %s59, %s61
    %p68 = scmp.eq.s32.totalorder %s16, 1
    %p69 = por %p67, %p68
    %p70 = scmp.ne.s32.totalorder %s61, %s62
    %p71 = scmp.eq.s32.totalorder %s16, 0
    %p72 = por %p70, %p71
    %p73 = scmp.ne.s32.totalorder %s61, %s62
    %p74 = scmp.eq.s32.totalorder %s17, 1
    %p75 = por %p73, %p74
    %p77 = scmp.ne.s32.totalorder %s62, %s76
    %p78 = scmp.eq.s32.totalorder %s17, 0
    %p79 = por %p77, %p78
    %s81 = sadd.s32 %s80, 1
    %p84 = scmp.eq.s32.totalorder %s11, 1
    %p85 = scmp.ne.s32.totalorder %s80, %s82
    %p86 = scmp.eq.s32.totalorder %s11, 0
    %p87 = por %p85, %p86
    %p88 = scmp.ne.s32.totalorder %s80, %s82
    %p89 = scmp.eq.s32.totalorder %s16, 1
    %p90 = por %p88, %p89
    %p91 = scmp.ne.s32.totalorder %s82, %s83
    %p92 = scmp.eq.s32.totalorder %s16, 0
    %p93 = por %p91, %p92
    %p94 = scmp.ne.s32.totalorder %s82, %s83
    %p95 = scmp.eq.s32.totalorder %s17, 1
    %p96 = por %p94, %p95
    %p98 = scmp.ne.s32.totalorder %s83, %s97
    %p99 = scmp.eq.s32.totalorder %s17, 0
    %p100 = por %p98, %p99
    %s102 = sadd.s32 %s101, 1
    %p105 = scmp.eq.s32.totalorder %s11, 1
    %p106 = scmp.ne.s32.totalorder %s101, %s103
    %p107 = scmp.eq.s32.totalorder %s11, 0
    %p108 = por %p106, %p107
    %p109 = scmp.ne.s32.totalorder %s101, %s103
    %p110 = scmp.eq.s32.totalorder %s16, 1
    %p111 = por %p109, %p110
    %p112 = scmp.ne.s32.totalorder %s103, %s104
    %p113 = scmp.eq.s32.totalorder %s16, 0
    %p114 = por %p112, %p113
    %p115 = scmp.ne.s32.totalorder %s103, %s104
    %p116 = scmp.eq.s32.totalorder %s17, 1
    %p117 = por %p115, %p116
    %p119 = scmp.ne.s32.totalorder %s104, %s118
    %p120 = scmp.eq.s32.totalorder %s17, 0
    %p121 = por %p119, %p120
    %s123 = sadd.s32 %s122, 1
    %p126 = scmp.eq.s32.totalorder %s11, 1
    %p127 = scmp.ne.s32.totalorder %s122, %s124
    %p128 = scmp.eq.s32.totalorder %s11, 0
    %p129 = por %p127, %p128
    %p130 = scmp.ne.s32.totalorder %s122, %s124
    %p131 = scmp.eq.s32.totalorder %s16, 1
    %p132 = por %p130, %p131
    %p133 = scmp.ne.s32.totalorder %s124, %s125
    %p134 = scmp.eq.s32.totalorder %s16, 0
    %p135 = por %p133, %p134
    %p136 = scmp.ne.s32.totalorder %s124, %s125
    %p137 = scmp.eq.s32.totalorder %s17, 1
    %p138 = por %p136, %p137
    %p140 = scmp.ne.s32.totalorder %s125, %s139
    %p141 = scmp.eq.s32.totalorder %s17, 0
    %p142 = por %p140, %p141
    %s143 = ssub.s32 %s18, %s30
    %p144 = scmp.eq.s32.totalorder %s143, 0
    %s146 = sadd.s32 %s145, 1
    %s147 = scalar_select %p144, %s145, %s146
    %p150 = pneg %p144
    %p151 = scmp.eq.s32.totalorder %s11, 1
    %p152 = por %p150, %p151
    %p153 = scmp.ne.s32.totalorder %s145, %s148
    %p154 = scmp.eq.s32.totalorder %s11, 0
    %p155 = por %p153, %p154
    %p156 = scmp.ne.s32.totalorder %s145, %s148
    %p157 = scmp.eq.s32.totalorder %s16, 1
    %p158 = por %p156, %p157
    %p159 = scmp.ne.s32.totalorder %s148, %s149
    %p160 = scmp.eq.s32.totalorder %s16, 0
    %p161 = por %p159, %p160
    %p162 = scmp.ne.s32.totalorder %s148, %s149
    %p163 = scmp.eq.s32.totalorder %s17, 1
    %p164 = por %p162, %p163
    %p166 = scmp.ne.s32.totalorder %s149, %s165
    %p167 = scmp.eq.s32.totalorder %s17, 0
    %p168 = por %p166, %p167
    %p169 = scmp.le.s32.totalorder 1, %s11
    %p170 = scmp.lt.s32.totalorder %s11, 3
    %p171 = pnand %p169, %p170
    %p172 = pneg %p171
    // Predicated region
    $region9: #{rcab_forward.2} parent=5 // pred_check
      _
    $region10: #{rcab_forward.2} parent=5 // pred_check_branch
      %174 = sbr.rel (%p171) target = $region12
    $region11: #{rcab_forward.2} parent=5 // pred_region
      %s175 = ssub.s32 %s11, 1
      // Predicated region
      $region13: #{rcab_forward.2} parent=11 // pred_check
        %p176 = pneg %p72
      $region14: #{rcab_forward.2} parent=11 // pred_check_branch
        %178 = sbr.rel (%p176) target = $region16
      $region15: #{rcab_forward.2} parent=11 // pred_region
        _
      $region16: #{rcab_forward.2} parent=11 // pred_fallthru
        _
      // Predicated region
      $region17: #{rcab_forward.2} parent=11 // pred_check
        %p179 = pneg %p93
      $region18: #{rcab_forward.2} parent=11 // pred_check_branch
        %181 = sbr.rel (%p179) target = $region20
      $region19: #{rcab_forward.2} parent=11 // pred_region
        _
      $region20: #{rcab_forward.2} parent=11 // pred_fallthru
        _
      // Predicated region
      $region21: #{rcab_forward.2} parent=11 // pred_check
        %p182 = pneg %p114
      $region22: #{rcab_forward.2} parent=11 // pred_check_branch
        %184 = sbr.rel (%p182) target = $region24
      $region23: #{rcab_forward.2} parent=11 // pred_region
        _
      $region24: #{rcab_forward.2} parent=11 // pred_fallthru
        _
      // Predicated region
      $region25: #{rcab_forward.2} parent=11 // pred_check
        %p185 = pneg %p135
      $region26: #{rcab_forward.2} parent=11 // pred_check_branch
        %187 = sbr.rel (%p185) target = $region28
      $region27: #{rcab_forward.2} parent=11 // pred_region
        _
      $region28: #{rcab_forward.2} parent=11 // pred_fallthru
        _
    $region12: #{rcab_forward.2} parent=5 // pred_fallthru
      _
    %p188 = scmp.lt.s32.totalorder %s11, 2
    // Predicated region
    $region29: #{rcab_forward.2} parent=5 // pred_check
      %p189 = pneg %p188
    $region30: #{rcab_forward.2} parent=5 // pred_check_branch
      %191 = sbr.rel (%p189) target = $region32
    $region31: #{rcab_forward.2} parent=5 // pred_region
      // Predicated region
      $region33: #{rcab_forward.2} parent=31 // pred_check
        %p192 = pneg %p45
      $region34: #{rcab_forward.2} parent=31 // pred_check_branch
        %194 = sbr.rel (%p192) target = $region36
      $region35: #{rcab_forward.2} parent=31 // pred_region
        %s195 = smul.u32 2, %s19
        %p196 = scmp.lt.s32.totalorder %s18, 1
        %s197 = scalar_select %p196, %s18, 1
        %p198 = scmp.lt.s32.totalorder %s195, 1
        %s199 = scalar_select %p198, %s195, 1
        %s200 = smul.addr %s197, 48
        %s201 = sadd.s32 %s199, %s200
        %s202 = smul.addr %s201, 8
        %s203 = scalar_lea.vmem %s0, %s202
        %s204 = smul.u32 2, %s19
      $region36: #{rcab_forward.2} parent=31 // pred_fallthru
        _
    $region32: #{rcab_forward.2} parent=5 // pred_fallthru
      _
    %p205 = scmp.le.s32.totalorder 1, %s11
    %p206 = scmp.lt.s32.totalorder %s11, 3
    %p207 = pnand %p205, %p206
    %p208 = pneg %p207
    // Predicated region
    $region37: #{rcab_forward.2} parent=5 // pred_check
      _
    $region38: #{rcab_forward.2} parent=5 // pred_check_branch
      %210 = sbr.rel (%p207) target = $region40
    $region39: #{rcab_forward.2} parent=5 // pred_region
      %s211 = ssub.s32 %s11, 1
      %s212 = smul.u32 2, %s21
      %p213 = scmp.lt.s32.totalorder %s20, 1
      %s214 = scalar_select %p213, %s20, 1
      %p215 = scmp.lt.s32.totalorder %s212, 1
      %s216 = scalar_select %p215, %s212, 1
      %s217 = smul.addr %s214, 48
      %s218 = sadd.s32 %s216, %s217
      %s219 = smul.addr %s218, 8
      %s220 = scalar_lea.vmem %s0, %s219
      %p221 = pneg %p51
      %p222 = pneg %p48
      %p223 = pneg %p72
      %p224 = pneg %p69
      %p225 = pneg %p93
      %p226 = pneg %p90
      %p227 = pneg %p114
      %p228 = pneg %p111
      %p229 = pneg %p135
      %p230 = pneg %p132
      %p231 = pneg %p161
      %p232 = pneg %p158
      %p233 = scmp.lt.s32.totalorder %s20, 1
      %s234 = scalar_select %p233, %s20, 1
      %s235 = smul.addr %s234, 24
      %s236 = smul.addr %s235, 8
      %s237 = scalar_lea.vmem %s5, %s236
      %s238 = smul.u32 2, %s21
      %p239 = scmp.lt.s32.totalorder %s20, 1
      %s240 = scalar_select %p239, %s20, 1
      %p241 = scmp.lt.s32.totalorder %s238, 1
      %s242 = scalar_select %p241, %s238, 1
      %s243 = smul.addr %s240, 48
      %s244 = sadd.s32 %s242, %s243
      %s245 = smul.addr %s244, 8
      %s246 = scalar_lea.vmem %s0, %s245
      %s247 = smul.u32 2, %s21
      %p248 = scmp.lt.s32.totalorder %s20, 1
      %s249 = scalar_select %p248, %s20, 1
      %s250 = smul.addr %s249, 24
      %s251 = smul.addr %s250, 8
      %s252 = scalar_lea.vmem %s5, %s251
      %p253 = scmp.eq.s32.totalorder %s21, 0
      // Predicated region
      $region41: #{rcab_forward.2} parent=39 // pred_check
        %p254 = pneg %p253
      $region42: #{rcab_forward.2} parent=39 // pred_check_branch
        %256 = sbr.rel (%p254) target = $region44
      $region43: #{rcab_forward.2} parent=39 // pred_region
        %vm257 = vcmask 7168
        %258 = vst.msk [vmem:[#allocation2] sm:$0xff] %vm257, 0.0
        %259 = vst.msk [vmem:[#allocation2 + $0x8] sm:$0xff] %vm257, 0.0
        %260 = vst.msk [vmem:[#allocation2 + $0x10] sm:$0xff] %vm257, 0.0
        %261 = vst.msk [vmem:[#allocation2 + $0x18] sm:$0xff] %vm257, 0.0
        %262 = vst.msk [vmem:[#allocation2 + $0x20] sm:$0xff] %vm257, 0.0
        %263 = vst.msk [vmem:[#allocation2 + $0x28] sm:$0xff] %vm257, 0.0
        %264 = vst.msk [vmem:[#allocation2 + $0x30] sm:$0xff] %vm257, 0.0
        %265 = vst.msk [vmem:[#allocation2 + $0x38] sm:$0xff] %vm257, 0.0
        %266 = vst.msk [vmem:[#allocation2 + $0x40] sm:$0xff] %vm257, 0.0
        %267 = vst.msk [vmem:[#allocation2 + $0x48] sm:$0xff] %vm257, 0.0
        %268 = vst.msk [vmem:[#allocation2 + $0x50] sm:$0xff] %vm257, 0.0
        %269 = vst.msk [vmem:[#allocation2 + $0x58] sm:$0xff] %vm257, 0.0
        %270 = vst.msk [vmem:[#allocation2 + $0x60] sm:$0xff] %vm257, 0.0
        %271 = vst.msk [vmem:[#allocation2 + $0x68] sm:$0xff] %vm257, 0.0
        %272 = vst.msk [vmem:[#allocation2 + $0x70] sm:$0xff] %vm257, 0.0
        %273 = vst.msk [vmem:[#allocation2 + $0x78] sm:$0xff] %vm257, 0.0
        %274 = vst.msk [vmem:[#allocation2 + $0x80] sm:$0xff] %vm257, 0.0
        %275 = vst.msk [vmem:[#allocation2 + $0x88] sm:$0xff] %vm257, 0.0
        %276 = vst.msk [vmem:[#allocation2 + $0x90] sm:$0xff] %vm257, 0.0
        %277 = vst.msk [vmem:[#allocation2 + $0x98] sm:$0xff] %vm257, 0.0
        %278 = vst.msk [vmem:[#allocation2 + $0xa0] sm:$0xff] %vm257, 0.0
        %279 = vst.msk [vmem:[#allocation2 + $0xa8] sm:$0xff] %vm257, 0.0
        %280 = vst.msk [vmem:[#allocation2 + $0xb0] sm:$0xff] %vm257, 0.0
        %281 = vst.msk [vmem:[#allocation2 + $0xb8] sm:$0xff] %vm257, 0.0
      $region44: #{rcab_forward.2} parent=39 // pred_fallthru
        _
      %v282 = vld [vmem:[%s246] sm:$0xff]
      %v283 = vld [vmem:[%s246 + $0x10] sm:$0xff]
      %v284 = vld [vmem:[%s246 + $0x20] sm:$0xff]
      %v285 = vld [vmem:[%s246 + $0x30] sm:$0xff]
      %v286 = vld [vmem:[%s246 + $0x40] sm:$0xff]
      %v287 = vld [vmem:[%s246 + $0x50] sm:$0xff]
      %v288 = vld [vmem:[%s246 + $0x60] sm:$0xff]
      %v289 = vld [vmem:[%s246 + $0x70] sm:$0xff]
      %v290 = vld [vmem:[%s246 + $0x80] sm:$0xff]
      %v291 = vld [vmem:[%s246 + $0x90] sm:$0xff]
      %v292 = vld [vmem:[%s246 + $0xa0] sm:$0xff]
      %v293 = vld [vmem:[%s246 + $0xb0] sm:$0xff]
      %v294 = vld [vmem:[%s246 + $0xc0] sm:$0xff]
      %v295 = vld [vmem:[%s246 + $0xd0] sm:$0xff]
      %v296 = vld [vmem:[%s246 + $0xe0] sm:$0xff]
      %v297 = vld [vmem:[%s246 + $0xf0] sm:$0xff]
      %v298 = vld [vmem:[%s246 + $0x100] sm:$0xff]
      %v299 = vld [vmem:[%s246 + $0x110] sm:$0xff]
      %v300 = vld [vmem:[%s246 + $0x120] sm:$0xff]
      %v301 = vld [vmem:[%s246 + $0x130] sm:$0xff]
      %v302 = vld [vmem:[%s246 + $0x140] sm:$0xff]
      %v303 = vld [vmem:[%s246 + $0x150] sm:$0xff]
      %v304 = vld [vmem:[%s246 + $0x160] sm:$0xff]
      %v305 = vld [vmem:[%s246 + $0x170] sm:$0xff]
      %v306 = vld [vmem:[%s246 + $0x8] sm:$0xff]
      %v307 = vld [vmem:[%s246 + $0x18] sm:$0xff]
      %v308 = vld [vmem:[%s246 + $0x28] sm:$0xff]
      %v309 = vld [vmem:[%s246 + $0x38] sm:$0xff]
      %v310 = vld [vmem:[%s246 + $0x48] sm:$0xff]
      %v311 = vld [vmem:[%s246 + $0x58] sm:$0xff]
      %v312 = vld [vmem:[%s246 + $0x68] sm:$0xff]
      %v313 = vld [vmem:[%s246 + $0x78] sm:$0xff]
      %v314 = vld [vmem:[%s246 + $0x88] sm:$0xff]
      %v315 = vld [vmem:[%s246 + $0x98] sm:$0xff]
      %v316 = vld [vmem:[%s246 + $0xa8] sm:$0xff]
      %v317 = vld [vmem:[%s246 + $0xb8] sm:$0xff]
      %v318 = vld [vmem:[%s246 + $0xc8] sm:$0xff]
      %v319 = vld [vmem:[%s246 + $0xd8] sm:$0xff]
      %v320 = vld [vmem:[%s246 + $0xe8] sm:$0xff]
      %v321 = vld [vmem:[%s246 + $0xf8] sm:$0xff]
      %v322 = vld [vmem:[%s246 + $0x108] sm:$0xff]
      %v323 = vld [vmem:[%s246 + $0x118] sm:$0xff]
      %v324 = vld [vmem:[%s246 + $0x128] sm:$0xff]
      %v325 = vld [vmem:[%s246 + $0x138] sm:$0xff]
      %v326 = vld [vmem:[%s246 + $0x148] sm:$0xff]
      %v327 = vld [vmem:[%s246 + $0x158] sm:$0xff]
      %v328 = vld [vmem:[%s246 + $0x168] sm:$0xff]
      %v329 = vld [vmem:[%s246 + $0x178] sm:$0xff]
      %v330 = vadd.f32 %v282, %v306
      %v331 = vadd.f32 %v283, %v307
      %v332 = vadd.f32 %v284, %v308
      %v333 = vadd.f32 %v285, %v309
      %v334 = vadd.f32 %v286, %v310
      %v335 = vadd.f32 %v287, %v311
      %v336 = vadd.f32 %v288, %v312
      %v337 = vadd.f32 %v289, %v313
      %v338 = vadd.f32 %v290, %v314
      %v339 = vadd.f32 %v291, %v315
      %v340 = vadd.f32 %v292, %v316
      %v341 = vadd.f32 %v293, %v317
      %v342 = vadd.f32 %v294, %v318
      %v343 = vadd.f32 %v295, %v319
      %v344 = vadd.f32 %v296, %v320
      %v345 = vadd.f32 %v297, %v321
      %v346 = vadd.f32 %v298, %v322
      %v347 = vadd.f32 %v299, %v323
      %v348 = vadd.f32 %v300, %v324
      %v349 = vadd.f32 %v301, %v325
      %v350 = vadd.f32 %v302, %v326
      %v351 = vadd.f32 %v303, %v327
      %v352 = vadd.f32 %v304, %v328
      %v353 = vadd.f32 %v305, %v329
      %354 = vadd.xlane.f32.xlu0 %v330
      %v355 = vpop.xlane.xlu0 %354
      %356 = vadd.xlane.f32.xlu0 %v331
      %v357 = vpop.xlane.xlu0 %356
      %358 = vadd.xlane.f32.xlu0 %v332
      %v359 = vpop.xlane.xlu0 %358
      %360 = vadd.xlane.f32.xlu0 %v333
      %v361 = vpop.xlane.xlu0 %360
      %362 = vadd.xlane.f32.xlu0 %v334
      %v363 = vpop.xlane.xlu0 %362
      %364 = vadd.xlane.f32.xlu0 %v335
      %v365 = vpop.xlane.xlu0 %364
      %366 = vadd.xlane.f32.xlu0 %v336
      %v367 = vpop.xlane.xlu0 %366
      %368 = vadd.xlane.f32.xlu0 %v337
      %v369 = vpop.xlane.xlu0 %368
      %370 = vadd.xlane.f32.xlu0 %v338
      %v371 = vpop.xlane.xlu0 %370
      %372 = vadd.xlane.f32.xlu0 %v339
      %v373 = vpop.xlane.xlu0 %372
      %374 = vadd.xlane.f32.xlu0 %v340
      %v375 = vpop.xlane.xlu0 %374
      %376 = vadd.xlane.f32.xlu0 %v341
      %v377 = vpop.xlane.xlu0 %376
      %378 = vadd.xlane.f32.xlu0 %v342
      %v379 = vpop.xlane.xlu0 %378
      %380 = vadd.xlane.f32.xlu0 %v343
      %v381 = vpop.xlane.xlu0 %380
      %382 = vadd.xlane.f32.xlu0 %v344
      %v383 = vpop.xlane.xlu0 %382
      %384 = vadd.xlane.f32.xlu0 %v345
      %v385 = vpop.xlane.xlu0 %384
      %386 = vadd.xlane.f32.xlu0 %v346
      %v387 = vpop.xlane.xlu0 %386
      %388 = vadd.xlane.f32.xlu0 %v347
      %v389 = vpop.xlane.xlu0 %388
      %390 = vadd.xlane.f32.xlu0 %v348
      %v391 = vpop.xlane.xlu0 %390
      %392 = vadd.xlane.f32.xlu0 %v349
      %v393 = vpop.xlane.xlu0 %392
      %394 = vadd.xlane.f32.xlu0 %v350
      %v395 = vpop.xlane.xlu0 %394
      %396 = vadd.xlane.f32.xlu0 %v351
      %v397 = vpop.xlane.xlu0 %396
      %398 = vadd.xlane.f32.xlu0 %v352
      %v399 = vpop.xlane.xlu0 %398
      %400 = vadd.xlane.f32.xlu0 %v353
      %v401 = vpop.xlane.xlu0 %400
      %v402 = vadd.f32 %v355, 0.0
      %v403 = vadd.f32 %v357, 0.0
      %v404 = vadd.f32 %v359, 0.0
      %v405 = vadd.f32 %v361, 0.0
      %v406 = vadd.f32 %v363, 0.0
      %v407 = vadd.f32 %v365, 0.0
      %v408 = vadd.f32 %v367, 0.0
      %v409 = vadd.f32 %v369, 0.0
      %v410 = vadd.f32 %v371, 0.0
      %v411 = vadd.f32 %v373, 0.0
      %v412 = vadd.f32 %v375, 0.0
      %v413 = vadd.f32 %v377, 0.0
      %v414 = vadd.f32 %v379, 0.0
      %v415 = vadd.f32 %v381, 0.0
      %v416 = vadd.f32 %v383, 0.0
      %v417 = vadd.f32 %v385, 0.0
      %v418 = vadd.f32 %v387, 0.0
      %v419 = vadd.f32 %v389, 0.0
      %v420 = vadd.f32 %v391, 0.0
      %v421 = vadd.f32 %v393, 0.0
      %v422 = vadd.f32 %v395, 0.0
      %v423 = vadd.f32 %v397, 0.0
      %v424 = vadd.f32 %v399, 0.0
      %v425 = vadd.f32 %v401, 0.0
      %v426 = vld [vmem:[#allocation2] sm:$0xff]
      %v427 = vld [vmem:[#allocation2 + $0x8] sm:$0xff]
      %v428 = vld [vmem:[#allocation2 + $0x10] sm:$0xff]
      %v429 = vld [vmem:[#allocation2 + $0x18] sm:$0xff]
      %v430 = vld [vmem:[#allocation2 + $0x20] sm:$0xff]
      %v431 = vld [vmem:[#allocation2 + $0x28] sm:$0xff]
      %v432 = vld [vmem:[#allocation2 + $0x30] sm:$0xff]
      %v433 = vld [vmem:[#allocation2 + $0x38] sm:$0xff]
      %v434 = vld [vmem:[#allocation2 + $0x40] sm:$0xff]
      %v435 = vld [vmem:[#allocation2 + $0x48] sm:$0xff]
      %v436 = vld [vmem:[#allocation2 + $0x50] sm:$0xff]
      %v437 = vld [vmem:[#allocation2 + $0x58] sm:$0xff]
      %v438 = vld [vmem:[#allocation2 + $0x60] sm:$0xff]
      %v439 = vld [vmem:[#allocation2 + $0x68] sm:$0xff]
      %v440 = vld [vmem:[#allocation2 + $0x70] sm:$0xff]
      %v441 = vld [vmem:[#allocation2 + $0x78] sm:$0xff]
      %v442 = vld [vmem:[#allocation2 + $0x80] sm:$0xff]
      %v443 = vld [vmem:[#allocation2 + $0x88] sm:$0xff]
      %v444 = vld [vmem:[#allocation2 + $0x90] sm:$0xff]
      %v445 = vld [vmem:[#allocation2 + $0x98] sm:$0xff]
      %v446 = vld [vmem:[#allocation2 + $0xa0] sm:$0xff]
      %v447 = vld [vmem:[#allocation2 + $0xa8] sm:$0xff]
      %v448 = vld [vmem:[#allocation2 + $0xb0] sm:$0xff]
      %v449 = vld [vmem:[#allocation2 + $0xb8] sm:$0xff]
      %v450 = vadd.f32 %v426, %v402
      %v451 = vadd.f32 %v427, %v403
      %v452 = vadd.f32 %v428, %v404
      %v453 = vadd.f32 %v429, %v405
      %v454 = vadd.f32 %v430, %v406
      %v455 = vadd.f32 %v431, %v407
      %v456 = vadd.f32 %v432, %v408
      %v457 = vadd.f32 %v433, %v409
      %v458 = vadd.f32 %v434, %v410
      %v459 = vadd.f32 %v435, %v411
      %v460 = vadd.f32 %v436, %v412
      %v461 = vadd.f32 %v437, %v413
      %v462 = vadd.f32 %v438, %v414
      %v463 = vadd.f32 %v439, %v415
      %v464 = vadd.f32 %v440, %v416
      %v465 = vadd.f32 %v441, %v417
      %v466 = vadd.f32 %v442, %v418
      %v467 = vadd.f32 %v443, %v419
      %v468 = vadd.f32 %v444, %v420
      %v469 = vadd.f32 %v445, %v421
      %v470 = vadd.f32 %v446, %v422
      %v471 = vadd.f32 %v447, %v423
      %v472 = vadd.f32 %v448, %v424
      %v473 = vadd.f32 %v449, %v425
      %vm474 = vcmask 7168
      %475 = vst.msk [vmem:[#allocation2] sm:$0xff] %vm474, %v450
      %476 = vst.msk [vmem:[#allocation2 + $0x8] sm:$0xff] %vm474, %v451
      %477 = vst.msk [vmem:[#allocation2 + $0x10] sm:$0xff] %vm474, %v452
      %478 = vst.msk [vmem:[#allocation2 + $0x18] sm:$0xff] %vm474, %v453
      %479 = vst.msk [vmem:[#allocation2 + $0x20] sm:$0xff] %vm474, %v454
      %480 = vst.msk [vmem:[#allocation2 + $0x28] sm:$0xff] %vm474, %v455
      %481 = vst.msk [vmem:[#allocation2 + $0x30] sm:$0xff] %vm474, %v456
      %482 = vst.msk [vmem:[#allocation2 + $0x38] sm:$0xff] %vm474, %v457
      %483 = vst.msk [vmem:[#allocation2 + $0x40] sm:$0xff] %vm474, %v458
      %484 = vst.msk [vmem:[#allocation2 + $0x48] sm:$0xff] %vm474, %v459
      %485 = vst.msk [vmem:[#allocation2 + $0x50] sm:$0xff] %vm474, %v460
      %486 = vst.msk [vmem:[#allocation2 + $0x58] sm:$0xff] %vm474, %v461
      %487 = vst.msk [vmem:[#allocation2 + $0x60] sm:$0xff] %vm474, %v462
      %488 = vst.msk [vmem:[#allocation2 + $0x68] sm:$0xff] %vm474, %v463
      %489 = vst.msk [vmem:[#allocation2 + $0x70] sm:$0xff] %vm474, %v464
      %490 = vst.msk [vmem:[#allocation2 + $0x78] sm:$0xff] %vm474, %v465
      %491 = vst.msk [vmem:[#allocation2 + $0x80] sm:$0xff] %vm474, %v466
      %492 = vst.msk [vmem:[#allocation2 + $0x88] sm:$0xff] %vm474, %v467
      %493 = vst.msk [vmem:[#allocation2 + $0x90] sm:$0xff] %vm474, %v468
      %494 = vst.msk [vmem:[#allocation2 + $0x98] sm:$0xff] %vm474, %v469
      %495 = vst.msk [vmem:[#allocation2 + $0xa0] sm:$0xff] %vm474, %v470
      %496 = vst.msk [vmem:[#allocation2 + $0xa8] sm:$0xff] %vm474, %v471
      %497 = vst.msk [vmem:[#allocation2 + $0xb0] sm:$0xff] %vm474, %v472
      %498 = vst.msk [vmem:[#allocation2 + $0xb8] sm:$0xff] %vm474, %v473
      // Predicated region
      $region45: #{rcab_forward.2} parent=39 // pred_check
        %p499 = pneg %p253
      $region46: #{rcab_forward.2} parent=39 // pred_check_branch
        %501 = sbr.rel (%p499) target = $region48
      $region47: #{rcab_forward.2} parent=39 // pred_region
        %v502 = vld [vmem:[#allocation2] sm:$0xff]
        %v503 = vld [vmem:[#allocation2 + $0x8] sm:$0xff]
        %v504 = vld [vmem:[#allocation2 + $0x10] sm:$0xff]
        %v505 = vld [vmem:[#allocation2 + $0x18] sm:$0xff]
        %v506 = vld [vmem:[#allocation2 + $0x20] sm:$0xff]
        %v507 = vld [vmem:[#allocation2 + $0x28] sm:$0xff]
        %v508 = vld [vmem:[#allocation2 + $0x30] sm:$0xff]
        %v509 = vld [vmem:[#allocation2 + $0x38] sm:$0xff]
        %v510 = vld [vmem:[#allocation2 + $0x40] sm:$0xff]
        %v511 = vld [vmem:[#allocation2 + $0x48] sm:$0xff]
        %v512 = vld [vmem:[#allocation2 + $0x50] sm:$0xff]
        %v513 = vld [vmem:[#allocation2 + $0x58] sm:$0xff]
        %v514 = vld [vmem:[#allocation2 + $0x60] sm:$0xff]
        %v515 = vld [vmem:[#allocation2 + $0x68] sm:$0xff]
        %v516 = vld [vmem:[#allocation2 + $0x70] sm:$0xff]
        %v517 = vld [vmem:[#allocation2 + $0x78] sm:$0xff]
        %v518 = vld [vmem:[#allocation2 + $0x80] sm:$0xff]
        %v519 = vld [vmem:[#allocation2 + $0x88] sm:$0xff]
        %v520 = vld [vmem:[#allocation2 + $0x90] sm:$0xff]
        %v521 = vld [vmem:[#allocation2 + $0x98] sm:$0xff]
        %v522 = vld [vmem:[#allocation2 + $0xa0] sm:$0xff]
        %v523 = vld [vmem:[#allocation2 + $0xa8] sm:$0xff]
        %v524 = vld [vmem:[#allocation2 + $0xb0] sm:$0xff]
        %v525 = vld [vmem:[#allocation2 + $0xb8] sm:$0xff]
        %v526 = vmul.f32 %v502, 0.00390625
        %v527 = vmul.f32 %v503, 0.00390625
        %v528 = vmul.f32 %v504, 0.00390625
        %v529 = vmul.f32 %v505, 0.00390625
        %v530 = vmul.f32 %v506, 0.00390625
        %v531 = vmul.f32 %v507, 0.00390625
        %v532 = vmul.f32 %v508, 0.00390625
        %v533 = vmul.f32 %v509, 0.00390625
        %v534 = vmul.f32 %v510, 0.00390625
        %v535 = vmul.f32 %v511, 0.00390625
        %v536 = vmul.f32 %v512, 0.00390625
        %v537 = vmul.f32 %v513, 0.00390625
        %v538 = vmul.f32 %v514, 0.00390625
        %v539 = vmul.f32 %v515, 0.00390625
        %v540 = vmul.f32 %v516, 0.00390625
        %v541 = vmul.f32 %v517, 0.00390625
        %v542 = vmul.f32 %v518, 0.00390625
        %v543 = vmul.f32 %v519, 0.00390625
        %v544 = vmul.f32 %v520, 0.00390625
        %v545 = vmul.f32 %v521, 0.00390625
        %v546 = vmul.f32 %v522, 0.00390625
        %v547 = vmul.f32 %v523, 0.00390625
        %v548 = vmul.f32 %v524, 0.00390625
        %v549 = vmul.f32 %v525, 0.00390625
        %v550 = vld [vmem:[%s1] sm:$0xff]
        %v551 = vld [vmem:[%s1 + $0x8] sm:$0xff]
        %v552 = vld [vmem:[%s1 + $0x10] sm:$0xf]
        %v553 = vld [vmem:[%s1 + $0x18] sm:$0xf]
        %v554 = vld [vmem:[%s2] sm:$0xff]
        %v555 = vld [vmem:[%s2 + $0x8] sm:$0xf]
        %vm556 = vcmask 523264
        %v558 = vsel %vm556, %v551, 0
        %v561 = vsel %vm556, %v553, 0
        %563 = vmatprep.subr.mxu0 0.0
        %564 = vmatpush1.msra.mxu0 %v526
        %565 = vmatprep.subr.mxu0 0.0
        %566 = vmatpush1.msra.mxu0 %v527
        %567 = vmatprep.subr.mxu0 0.0
        %568 = vmatpush1.msra.mxu0 %v528
        %569 = vmatprep.subr.mxu0 0.0
        %570 = vmatpush1.msra.mxu0 %v529
        %571 = vmatprep.subr.mxu0 0.0
        %572 = vmatpush1.msra.mxu0 %v530
        %573 = vmatprep.subr.mxu0 0.0
        %574 = vmatpush1.msra.mxu0 %v531
        %575 = vmatprep.subr.mxu0 0.0
        %576 = vmatpush1.msra.mxu0 %v532
        %577 = vmatprep.subr.mxu0 0.0
        %578 = vmatpush1.msra.mxu0 %v533
        %579 = vmatprep.subr.mxu0 0.0
        %580 = vmatpush1.msra.mxu0 %v534
        %581 = vmatprep.subr.mxu0 0.0
        %582 = vmatpush1.msra.mxu0 %v535
        %583 = vmatprep.subr.mxu0 0.0
        %584 = vmatpush1.msra.mxu0 %v536
        %585 = vmatprep.subr.mxu0 0.0
        %586 = vmatpush1.msra.mxu0 %v537
        %587 = vmatprep.subr.mxu0 0.0
        %588 = vmatpush1.msra.mxu0 %v538
        %589 = vmatprep.subr.mxu0 0.0
        %590 = vmatpush1.msra.mxu0 %v539
        %591 = vmatprep.subr.mxu0 0.0
        %592 = vmatpush1.msra.mxu0 %v540
        %593 = vmatprep.subr.mxu0 0.0
        %594 = vmatpush1.msra.mxu0 %v541
        %595 = vmatprep.subr.mxu0 0.0
        %596 = vmatpush1.msra.mxu0 %v542
        %597 = vmatprep.subr.mxu0 0.0
        %598 = vmatpush1.msra.mxu0 %v543
        %599 = vmatprep.subr.mxu0 0.0
        %600 = vmatpush1.msra.mxu0 %v544
        %601 = vmatprep.subr.mxu0 0.0
        %602 = vmatpush1.msra.mxu0 %v545
        %603 = vmatprep.subr.mxu0 0.0
        %604 = vmatpush1.msra.mxu0 %v546
        %605 = vmatprep.subr.mxu0 0.0
        %606 = vmatpush1.msra.mxu0 %v547
        %607 = vmatprep.subr.mxu0 0.0
        %608 = vmatpush1.msra.mxu0 %v548
        %609 = vmatprep.subr.mxu0 0.0
        %610 = vmatpush1.msra.mxu0 %v549
        %611 = vmatprep.subr.mxu0 0.0
        %612 = vmatpush1.msra.mxu0 0.0
        %613 = vmatprep.subr.mxu0 0.0
        %614 = vmatpush1.msra.mxu0 0.0
        %615 = vmatprep.subr.mxu0 0.0
        %616 = vmatpush1.msra.mxu0 0.0
        %617 = vmatprep.subr.mxu0 0.0
        %618 = vmatpush1.msra.mxu0 0.0
        %619 = vmatprep.subr.mxu0 0.0
        %620 = vmatpush1.msra.mxu0 0.0
        %621 = vmatprep.subr.mxu0 0.0
        %622 = vmatpush1.msra.mxu0 0.0
        %623 = vmatprep.subr.mxu0 0.0
        %624 = vmatpush1.msra.mxu0 0.0
        %625 = vmatprep.subr.mxu0 0.0
        %626 = vmatpush1.msra.mxu0 0.0
        %627 = vmatprep.mubr.f32.mxu0 %v558
        %628 = vmatmul.mubr.f32.gmra.mrb[0].mxu0 %v550
        %v629 = vpop.f32.mrb[0].mxu0
        %v630 = vadd.f32 %v554, %v629
        %v631 = vpop.f32.mrb[0].mxu0
        %632 = vmatprep.mubr.f32.mxu0 %v561
        %633 = vmatmul.mubr.f32.gmra.mrb[0].mxu0 %v552
        %v634 = vpop.f32.mrb[0].mxu0
        %v635 = vadd.f32 %v555, %v634
        %v636 = vpop.f32.mrb[0].mxu0
        %637 = vdwg.mxu0
        %v638 = vmax.f32 %v630, 0.0
        %v639 = vmax.f32 %v635, 0.0
        %v640 = vld [vmem:[%s3] sm:$0xff]
        %v641 = vld [vmem:[%s3 + $0x8] sm:$0xff]
        %v642 = vld [vmem:[%s3 + $0x10] sm:$0xff]
        %v643 = vld [vmem:[%s3 + $0x18] sm:$0xff]
        %v644 = vld [vmem:[%s3 + $0x20] sm:$0xff]
        %v645 = vld [vmem:[%s3 + $0x28] sm:$0xff]
        %v646 = vld [vmem:[%s3 + $0x30] sm:$0xff]
        %v647 = vld [vmem:[%s3 + $0x38] sm:$0xff]
        %v648 = vld [vmem:[%s3 + $0x40] sm:$0xff]
        %v649 = vld [vmem:[%s3 + $0x48] sm:$0xff]
        %v650 = vld [vmem:[%s3 + $0x50] sm:$0xff]
        %v651 = vld [vmem:[%s3 + $0x58] sm:$0xff]
        %v652 = vld [vmem:[%s3 + $0x60] sm:$0xff]
        %v653 = vld [vmem:[%s3 + $0x68] sm:$0xff]
        %v654 = vld [vmem:[%s3 + $0x70] sm:$0xff]
        %v655 = vld [vmem:[%s3 + $0x78] sm:$0xff]
        %v656 = vld [vmem:[%s3 + $0x80] sm:$0xff]
        %v657 = vld [vmem:[%s3 + $0x88] sm:$0xff]
        %v658 = vld [vmem:[%s3 + $0x90] sm:$0xff]
        %v659 = vld [vmem:[%s3 + $0x98] sm:$0xff]
        %v660 = vld [vmem:[%s3 + $0xa0] sm:$0xff]
        %v661 = vld [vmem:[%s3 + $0xa8] sm:$0xff]
        %v662 = vld [vmem:[%s3 + $0xb0] sm:$0xff]
        %v663 = vld [vmem:[%s3 + $0xb8] sm:$0xff]
        %v664 = vld [vmem:[%s4] sm:$0xff]
        %v665 = vld [vmem:[%s4 + $0x8] sm:$0xff]
        %v666 = vld [vmem:[%s4 + $0x10] sm:$0xff]
        %v667 = vld [vmem:[%s4 + $0x18] sm:$0xff]
        %v668 = vld [vmem:[%s4 + $0x20] sm:$0xff]
        %v669 = vld [vmem:[%s4 + $0x28] sm:$0xff]
        %v670 = vld [vmem:[%s4 + $0x30] sm:$0xff]
        %v671 = vld [vmem:[%s4 + $0x38] sm:$0xff]
        %v672 = vld [vmem:[%s4 + $0x40] sm:$0xff]
        %v673 = vld [vmem:[%s4 + $0x48] sm:$0xff]
        %v674 = vld [vmem:[%s4 + $0x50] sm:$0xff]
        %v675 = vld [vmem:[%s4 + $0x58] sm:$0xff]
        %v676 = vld [vmem:[%s4 + $0x60] sm:$0xff]
        %v677 = vld [vmem:[%s4 + $0x68] sm:$0xff]
        %v678 = vld [vmem:[%s4 + $0x70] sm:$0xff]
        %v679 = vld [vmem:[%s4 + $0x78] sm:$0xff]
        %v680 = vld [vmem:[%s4 + $0x80] sm:$0xff]
        %v681 = vld [vmem:[%s4 + $0x88] sm:$0xff]
        %v682 = vld [vmem:[%s4 + $0x90] sm:$0xff]
        %v683 = vld [vmem:[%s4 + $0x98] sm:$0xff]
        %v684 = vld [vmem:[%s4 + $0xa0] sm:$0xff]
        %v685 = vld [vmem:[%s4 + $0xa8] sm:$0xff]
        %v686 = vld [vmem:[%s4 + $0xb0] sm:$0xff]
        %v687 = vld [vmem:[%s4 + $0xb8] sm:$0xff]
        %vm688 = vcmask 97280
        %v690 = vsel %vm688, %v640, 0
        %v693 = vsel %vm688, %v641, 0
        %v696 = vsel %vm688, %v642, 0
        %v699 = vsel %vm688, %v643, 0
        %v702 = vsel %vm688, %v644, 0
        %v705 = vsel %vm688, %v645, 0
        %v708 = vsel %vm688, %v646, 0
        %v711 = vsel %vm688, %v647, 0
        %v714 = vsel %vm688, %v648, 0
        %v717 = vsel %vm688, %v649, 0
        %v720 = vsel %vm688, %v650, 0
        %v723 = vsel %vm688, %v651, 0
        %v726 = vsel %vm688, %v652, 0
        %v729 = vsel %vm688, %v653, 0
        %v732 = vsel %vm688, %v654, 0
        %v735 = vsel %vm688, %v655, 0
        %v738 = vsel %vm688, %v656, 0
        %v741 = vsel %vm688, %v657, 0
        %v744 = vsel %vm688, %v658, 0
        %v747 = vsel %vm688, %v659, 0
        %v750 = vsel %vm688, %v660, 0
        %v753 = vsel %vm688, %v661, 0
        %v756 = vsel %vm688, %v662, 0
        %v759 = vsel %vm688, %v663, 0
        %vm761 = vcmask 1043456
        %v763 = vsel %vm761, %v639, 0
        %765 = vmatprep.subr.mxu0 0.0
        %766 = vmatpush1.msra.mxu0 %v638
        %767 = vmatprep.subr.mxu0 0.0
        %768 = vmatpush1.msra.mxu0 %v763
        %769 = vmatprep.subr.mxu0 0.0
        %770 = vmatpush1.msra.mxu0 0.0
        %771 = vmatprep.subr.mxu0 0.0
        %772 = vmatpush1.msra.mxu0 0.0
        %773 = vmatprep.subr.mxu0 0.0
        %774 = vmatpush1.msra.mxu0 0.0
        %775 = vmatprep.subr.mxu0 0.0
        %776 = vmatpush1.msra.mxu0 0.0
        %777 = vmatprep.subr.mxu0 0.0
        %778 = vmatpush1.msra.mxu0 0.0
        %779 = vmatprep.subr.mxu0 0.0
        %780 = vmatpush1.msra.mxu0 0.0
        %781 = vmatprep.subr.mxu0 0.0
        %782 = vmatpush1.msra.mxu0 0.0
        %783 = vmatprep.subr.mxu0 0.0
        %784 = vmatpush1.msra.mxu0 0.0
        %785 = vmatprep.subr.mxu0 0.0
        %786 = vmatpush1.msra.mxu0 0.0
        %787 = vmatprep.subr.mxu0 0.0
        %788 = vmatpush1.msra.mxu0 0.0
        %789 = vmatprep.subr.mxu0 0.0
        %790 = vmatpush1.msra.mxu0 0.0
        %791 = vmatprep.subr.mxu0 0.0
        %792 = vmatpush1.msra.mxu0 0.0
        %793 = vmatprep.subr.mxu0 0.0
        %794 = vmatpush1.msra.mxu0 0.0
        %795 = vmatprep.subr.mxu0 0.0
        %796 = vmatpush1.msra.mxu0 0.0
        %797 = vmatprep.subr.mxu0 0.0
        %798 = vmatpush1.msra.mxu0 0.0
        %799 = vmatprep.subr.mxu0 0.0
        %800 = vmatpush1.msra.mxu0 0.0
        %801 = vmatprep.subr.mxu0 0.0
        %802 = vmatpush1.msra.mxu0 0.0
        %803 = vmatprep.subr.mxu0 0.0
        %804 = vmatpush1.msra.mxu0 0.0
        %805 = vmatprep.subr.mxu0 0.0
        %806 = vmatpush1.msra.mxu0 0.0
        %807 = vmatprep.subr.mxu0 0.0
        %808 = vmatpush1.msra.mxu0 0.0
        %809 = vmatprep.subr.mxu0 0.0
        %810 = vmatpush1.msra.mxu0 0.0
        %811 = vmatprep.subr.mxu0 0.0
        %812 = vmatpush1.msra.mxu0 0.0
        %813 = vmatprep.subr.mxu0 0.0
        %814 = vmatpush1.msra.mxu0 0.0
        %815 = vmatprep.subr.mxu0 0.0
        %816 = vmatpush1.msra.mxu0 0.0
        %817 = vmatprep.subr.mxu0 0.0
        %818 = vmatpush1.msra.mxu0 0.0
        %819 = vmatprep.subr.mxu0 0.0
        %820 = vmatpush1.msra.mxu0 0.0
        %821 = vmatprep.subr.mxu0 0.0
        %822 = vmatpush1.msra.mxu0 0.0
        %823 = vmatprep.subr.mxu0 0.0
        %824 = vmatpush1.msra.mxu0 0.0
        %825 = vmatprep.subr.mxu0 0.0
        %826 = vmatpush1.msra.mxu0 0.0
        %827 = vmatprep.subr.mxu0 0.0
        %828 = vmatpush1.msra.mxu0 0.0
        %829 = vmatprep.mubr.f32.mxu0 0.0
        %830 = vmatmul.mubr.f32.gmra.mrb[0].mxu0 %v690
        %v831 = vpop.f32.mrb[0].mxu0
        %v832 = vadd.f32 %v664, %v831
        %v833 = vpop.f32.mrb[0].mxu0
        %834 = vmatprep.mubr.f32.mxu0 0.0
        %835 = vmatmul.mubr.f32.gmra.mrb[0].mxu0 %v693
        %v836 = vpop.f32.mrb[0].mxu0
        %v837 = vadd.f32 %v665, %v836
        %v838 = vpop.f32.mrb[0].mxu0
        %839 = vmatprep.mubr.f32.mxu0 0.0
        %840 = vmatmul.mubr.f32.gmra.mrb[0].mxu0 %v696
        %v841 = vpop.f32.mrb[0].mxu0
        %v842 = vadd.f32 %v666, %v841
        %v843 = vpop.f32.mrb[0].mxu0
        %844 = vmatprep.mubr.f32.mxu0 0.0
        %845 = vmatmul.mubr.f32.gmra.mrb[0].mxu0 %v699
        %v846 = vpop.f32.mrb[0].mxu0
        %v847 = vadd.f32 %v667, %v846
        %v848 = vpop.f32.mrb[0].mxu0
        %849 = vmatprep.mubr.f32.mxu0 0.0
        %850 = vmatmul.mubr.f32.gmra.mrb[0].mxu0 %v702
        %v851 = vpop.f32.mrb[0].mxu0
        %v852 = vadd.f32 %v668, %v851
        %v853 = vpop.f32.mrb[0].mxu0
        %854 = vmatprep.mubr.f32.mxu0 0.0
        %855 = vmatmul.mubr.f32.gmra.mrb[0].mxu0 %v705
        %v856 = vpop.f32.mrb[0].mxu0
        %v857 = vadd.f32 %v669, %v856
        %v858 = vpop.f32.mrb[0].mxu0
        %859 = vmatprep.mubr.f32.mxu0 0.0
        %860 = vmatmul.mubr.f32.gmra.mrb[0].mxu0 %v708
        %v861 = vpop.f32.mrb[0].mxu0
        %v862 = vadd.f32 %v670, %v861
        %v863 = vpop.f32.mrb[0].mxu0
        %864 = vmatprep.mubr.f32.mxu0 0.0
        %865 = vmatmul.mubr.f32.gmra.mrb[0].mxu0 %v711
        %v866 = vpop.f32.mrb[0].mxu0
        %v867 = vadd.f32 %v671, %v866
        %v868 = vpop.f32.mrb[0].mxu0
        %869 = vmatprep.mubr.f32.mxu0 0.0
        %870 = vmatmul.mubr.f32.gmra.mrb[0].mxu0 %v714
        %v871 = vpop.f32.mrb[0].mxu0
        %v872 = vadd.f32 %v672, %v871
        %v873 = vpop.f32.mrb[0].mxu0
        %874 = vmatprep.mubr.f32.mxu0 0.0
        %875 = vmatmul.mubr.f32.gmra.mrb[0].mxu0 %v717
        %v876 = vpop.f32.mrb[0].mxu0
        %v877 = vadd.f32 %v673, %v876
        %v878 = vpop.f32.mrb[0].mxu0
        %879 = vmatprep.mubr.f32.mxu0 0.0
        %880 = vmatmul.mubr.f32.gmra.mrb[0].mxu0 %v720
        %v881 = vpop.f32.mrb[0].mxu0
        %v882 = vadd.f32 %v674, %v881
        %v883 = vpop.f32.mrb[0].mxu0
        %884 = vmatprep.mubr.f32.mxu0 0.0
        %885 = vmatmul.mubr.f32.gmra.mrb[0].mxu0 %v723
        %v886 = vpop.f32.mrb[0].mxu0
        %v887 = vadd.f32 %v675, %v886
        %v888 = vpop.f32.mrb[0].mxu0
        %889 = vmatprep.mubr.f32.mxu0 0.0
        %890 = vmatmul.mubr.f32.gmra.mrb[0].mxu0 %v726
        %v891 = vpop.f32.mrb[0].mxu0
        %v892 = vadd.f32 %v676, %v891
        %v893 = vpop.f32.mrb[0].mxu0
        %894 = vmatprep.mubr.f32.mxu0 0.0
        %895 = vmatmul.mubr.f32.gmra.mrb[0].mxu0 %v729
        %v896 = vpop.f32.mrb[0].mxu0
        %v897 = vadd.f32 %v677, %v896
        %v898 = vpop.f32.mrb[0].mxu0
        %899 = vmatprep.mubr.f32.mxu0 0.0
        %900 = vmatmul.mubr.f32.gmra.mrb[0].mxu0 %v732
        %v901 = vpop.f32.mrb[0].mxu0
        %v902 = vadd.f32 %v678, %v901
        %v903 = vpop.f32.mrb[0].mxu0
        %904 = vmatprep.mubr.f32.mxu0 0.0
        %905 = vmatmul.mubr.f32.gmra.mrb[0].mxu0 %v735
        %v906 = vpop.f32.mrb[0].mxu0
        %v907 = vadd.f32 %v679, %v906
        %v908 = vpop.f32.mrb[0].mxu0
        %909 = vmatprep.mubr.f32.mxu0 0.0
        %910 = vmatmul.mubr.f32.gmra.mrb[0].mxu0 %v738
        %v911 = vpop.f32.mrb[0].mxu0
        %v912 = vadd.f32 %v680, %v911
        %v913 = vpop.f32.mrb[0].mxu0
        %914 = vmatprep.mubr.f32.mxu0 0.0
        %915 = vmatmul.mubr.f32.gmra.mrb[0].mxu0 %v741
        %v916 = vpop.f32.mrb[0].mxu0
        %v917 = vadd.f32 %v681, %v916
        %v918 = vpop.f32.mrb[0].mxu0
        %919 = vmatprep.mubr.f32.mxu0 0.0
        %920 = vmatmul.mubr.f32.gmra.mrb[0].mxu0 %v744
        %v921 = vpop.f32.mrb[0].mxu0
        %v922 = vadd.f32 %v682, %v921
        %v923 = vpop.f32.mrb[0].mxu0
        %924 = vmatprep.mubr.f32.mxu0 0.0
        %925 = vmatmul.mubr.f32.gmra.mrb[0].mxu0 %v747
        %v926 = vpop.f32.mrb[0].mxu0
        %v927 = vadd.f32 %v683, %v926
        %v928 = vpop.f32.mrb[0].mxu0
        %929 = vmatprep.mubr.f32.mxu0 0.0
        %930 = vmatmul.mubr.f32.gmra.mrb[0].mxu0 %v750
        %v931 = vpop.f32.mrb[0].mxu0
        %v932 = vadd.f32 %v684, %v931
        %v933 = vpop.f32.mrb[0].mxu0
        %934 = vmatprep.mubr.f32.mxu0 0.0
        %935 = vmatmul.mubr.f32.gmra.mrb[0].mxu0 %v753
        %v936 = vpop.f32.mrb[0].mxu0
        %v937 = vadd.f32 %v685, %v936
        %v938 = vpop.f32.mrb[0].mxu0
        %939 = vmatprep.mubr.f32.mxu0 0.0
        %940 = vmatmul.mubr.f32.gmra.mrb[0].mxu0 %v756
        %v941 = vpop.f32.mrb[0].mxu0
        %v942 = vadd.f32 %v686, %v941
        %v943 = vpop.f32.mrb[0].mxu0
        %944 = vmatprep.mubr.f32.mxu0 0.0
        %945 = vmatmul.mubr.f32.gmra.mrb[0].mxu0 %v759
        %v946 = vpop.f32.mrb[0].mxu0
        %v947 = vadd.f32 %v687, %v946
        %v948 = vpop.f32.mrb[0].mxu0
        %949 = vdwg.mxu0
        %v950 = vxor.u32 %v832, 2147483648
        %v951 = vxor.u32 %v837, 2147483648
        %v952 = vxor.u32 %v842, 2147483648
        %v953 = vxor.u32 %v847, 2147483648
        %v954 = vxor.u32 %v852, 2147483648
        %v955 = vxor.u32 %v857, 2147483648
        %v956 = vxor.u32 %v862, 2147483648
        %v957 = vxor.u32 %v867, 2147483648
        %v958 = vxor.u32 %v872, 2147483648
        %v959 = vxor.u32 %v877, 2147483648
        %v960 = vxor.u32 %v882, 2147483648
        %v961 = vxor.u32 %v887, 2147483648
        %v962 = vxor.u32 %v892, 2147483648
        %v963 = vxor.u32 %v897, 2147483648
        %v964 = vxor.u32 %v902, 2147483648
        %v965 = vxor.u32 %v907, 2147483648
        %v966 = vxor.u32 %v912, 2147483648
        %v967 = vxor.u32 %v917, 2147483648
        %v968 = vxor.u32 %v922, 2147483648
        %v969 = vxor.u32 %v927, 2147483648
        %v970 = vxor.u32 %v932, 2147483648
        %v971 = vxor.u32 %v937, 2147483648
        %v972 = vxor.u32 %v942, 2147483648
        %v973 = vxor.u32 %v947, 2147483648
        %v974 = vmul.f32 %v950, 1.442695
        %v975 = vpow.pop %v974
        %v976 = vmul.f32 %v951, 1.442695
        %v977 = vpow.pop %v976
        %v978 = vmul.f32 %v952, 1.442695
        %v979 = vpow.pop %v978
        %v980 = vmul.f32 %v953, 1.442695
        %v981 = vpow.pop %v980
        %v982 = vmul.f32 %v954, 1.442695
        %v983 = vpow.pop %v982
        %v984 = vmul.f32 %v955, 1.442695
        %v985 = vpow.pop %v984
        %v986 = vmul.f32 %v956, 1.442695
        %v987 = vpow.pop %v986
        %v988 = vmul.f32 %v957, 1.442695
        %v989 = vpow.pop %v988
        %v990 = vmul.f32 %v958, 1.442695
        %v991 = vpow.pop %v990
        %v992 = vmul.f32 %v959, 1.442695
        %v993 = vpow.pop %v992
        %v994 = vmul.f32 %v960, 1.442695
        %v995 = vpow.pop %v994
        %v996 = vmul.f32 %v961, 1.442695
        %v997 = vpow.pop %v996
        %v998 = vmul.f32 %v962, 1.442695
        %v999 = vpow.pop %v998
        %v1000 = vmul.f32 %v963, 1.442695
        %v1001 = vpow.pop %v1000
        %v1002 = vmul.f32 %v964, 1.442695
        %v1003 = vpow.pop %v1002
        %v1004 = vmul.f32 %v965, 1.442695
        %v1005 = vpow.pop %v1004
        %v1006 = vmul.f32 %v966, 1.442695
        %v1007 = vpow.pop %v1006
        %v1008 = vmul.f32 %v967, 1.442695
        %v1009 = vpow.pop %v1008
        %v1010 = vmul.f32 %v968, 1.442695
        %v1011 = vpow.pop %v1010
        %v1012 = vmul.f32 %v969, 1.442695
        %v1013 = vpow.pop %v1012
        %v1014 = vmul.f32 %v970, 1.442695
        %v1015 = vpow.pop %v1014
        %v1016 = vmul.f32 %v971, 1.442695
        %v1017 = vpow.pop %v1016
        %v1018 = vmul.f32 %v972, 1.442695
        %v1019 = vpow.pop %v1018
        %v1020 = vmul.f32 %v973, 1.442695
        %v1021 = vpow.pop %v1020
        %v1022 = vadd.f32 %v975, 1.0
        %v1023 = vadd.f32 %v977, 1.0
        %v1024 = vadd.f32 %v979, 1.0
        %v1025 = vadd.f32 %v981, 1.0
        %v1026 = vadd.f32 %v983, 1.0
        %v1027 = vadd.f32 %v985, 1.0
        %v1028 = vadd.f32 %v987, 1.0
        %v1029 = vadd.f32 %v989, 1.0
        %v1030 = vadd.f32 %v991, 1.0
        %v1031 = vadd.f32 %v993, 1.0
        %v1032 = vadd.f32 %v995, 1.0
        %v1033 = vadd.f32 %v997, 1.0
        %v1034 = vadd.f32 %v999, 1.0
        %v1035 = vadd.f32 %v1001, 1.0
        %v1036 = vadd.f32 %v1003, 1.0
        %v1037 = vadd.f32 %v1005, 1.0
        %v1038 = vadd.f32 %v1007, 1.0
        %v1039 = vadd.f32 %v1009, 1.0
        %v1040 = vadd.f32 %v1011, 1.0
        %v1041 = vadd.f32 %v1013, 1.0
        %v1042 = vadd.f32 %v1015, 1.0
        %v1043 = vadd.f32 %v1017, 1.0
        %v1044 = vadd.f32 %v1019, 1.0
        %v1045 = vadd.f32 %v1021, 1.0
        %v1046 = vrcp.pop %v1022
        %v1047 = vmul.f32 1.0, %v1046
        %v1048 = vrcp.pop %v1023
        %v1049 = vmul.f32 1.0, %v1048
        %v1050 = vrcp.pop %v1024
        %v1051 = vmul.f32 1.0, %v1050
        %v1052 = vrcp.pop %v1025
        %v1053 = vmul.f32 1.0, %v1052
        %v1054 = vrcp.pop %v1026
        %v1055 = vmul.f32 1.0, %v1054
        %v1056 = vrcp.pop %v1027
        %v1057 = vmul.f32 1.0, %v1056
        %v1058 = vrcp.pop %v1028
        %v1059 = vmul.f32 1.0, %v1058
        %v1060 = vrcp.pop %v1029
        %v1061 = vmul.f32 1.0, %v1060
        %v1062 = vrcp.pop %v1030
        %v1063 = vmul.f32 1.0, %v1062
        %v1064 = vrcp.pop %v1031
        %v1065 = vmul.f32 1.0, %v1064
        %v1066 = vrcp.pop %v1032
        %v1067 = vmul.f32 1.0, %v1066
        %v1068 = vrcp.pop %v1033
        %v1069 = vmul.f32 1.0, %v1068
        %v1070 = vrcp.pop %v1034
        %v1071 = vmul.f32 1.0, %v1070
        %v1072 = vrcp.pop %v1035
        %v1073 = vmul.f32 1.0, %v1072
        %v1074 = vrcp.pop %v1036
        %v1075 = vmul.f32 1.0, %v1074
        %v1076 = vrcp.pop %v1037
        %v1077 = vmul.f32 1.0, %v1076
        %v1078 = vrcp.pop %v1038
        %v1079 = vmul.f32 1.0, %v1078
        %v1080 = vrcp.pop %v1039
        %v1081 = vmul.f32 1.0, %v1080
        %v1082 = vrcp.pop %v1040
        %v1083 = vmul.f32 1.0, %v1082
        %v1084 = vrcp.pop %v1041
        %v1085 = vmul.f32 1.0, %v1084
        %v1086 = vrcp.pop %v1042
        %v1087 = vmul.f32 1.0, %v1086
        %v1088 = vrcp.pop %v1043
        %v1089 = vmul.f32 1.0, %v1088
        %v1090 = vrcp.pop %v1044
        %v1091 = vmul.f32 1.0, %v1090
        %v1092 = vrcp.pop %v1045
        %v1093 = vmul.f32 1.0, %v1092
        %1094 = vst.msk [vmem:[%s252] sm:$0xff] %vm474, %v1047
        %1095 = vst.msk [vmem:[%s252 + $0x8] sm:$0xff] %vm474, %v1049
        %1096 = vst.msk [vmem:[%s252 + $0x10] sm:$0xff] %vm474, %v1051
        %1097 = vst.msk [vmem:[%s252 + $0x18] sm:$0xff] %vm474, %v1053
        %1098 = vst.msk [vmem:[%s252 + $0x20] sm:$0xff] %vm474, %v1055
        %1099 = vst.msk [vmem:[%s252 + $0x28] sm:$0xff] %vm474, %v1057
        %1100 = vst.msk [vmem:[%s252 + $0x30] sm:$0xff] %vm474, %v1059
        %1101 = vst.msk [vmem:[%s252 + $0x38] sm:$0xff] %vm474, %v1061
        %1102 = vst.msk [vmem:[%s252 + $0x40] sm:$0xff] %vm474, %v1063
        %1103 = vst.msk [vmem:[%s252 + $0x48] sm:$0xff] %vm474, %v1065
        %1104 = vst.msk [vmem:[%s252 + $0x50] sm:$0xff] %vm474, %v1067
        %1105 = vst.msk [vmem:[%s252 + $0x58] sm:$0xff] %vm474, %v1069
        %1106 = vst.msk [vmem:[%s252 + $0x60] sm:$0xff] %vm474, %v1071
        %1107 = vst.msk [vmem:[%s252 + $0x68] sm:$0xff] %vm474, %v1073
        %1108 = vst.msk [vmem:[%s252 + $0x70] sm:$0xff] %vm474, %v1075
        %1109 = vst.msk [vmem:[%s252 + $0x78] sm:$0xff] %vm474, %v1077
        %1110 = vst.msk [vmem:[%s252 + $0x80] sm:$0xff] %vm474, %v1079
        %1111 = vst.msk [vmem:[%s252 + $0x88] sm:$0xff] %vm474, %v1081
        %1112 = vst.msk [vmem:[%s252 + $0x90] sm:$0xff] %vm474, %v1083
        %1113 = vst.msk [vmem:[%s252 + $0x98] sm:$0xff] %vm474, %v1085
        %1114 = vst.msk [vmem:[%s252 + $0xa0] sm:$0xff] %vm474, %v1087
        %1115 = vst.msk [vmem:[%s252 + $0xa8] sm:$0xff] %vm474, %v1089
        %1116 = vst.msk [vmem:[%s252 + $0xb0] sm:$0xff] %vm474, %v1091
        %1117 = vst.msk [vmem:[%s252 + $0xb8] sm:$0xff] %vm474, %v1093
      $region48: #{rcab_forward.2} parent=39 // pred_fallthru
        _
      %p1118 = scmp.lt.s32.totalorder %s20, 1
      %s1119 = scalar_select %p1118, %s20, 1
      %s1120 = smul.addr %s1119, 24
      %s1121 = smul.addr %s1120, 8
      %s1122 = scalar_lea.vmem %s5, %s1121
      // Predicated region
      $region49: #{rcab_forward.2} parent=39 // pred_check
        %p1123 = pneg %p158
      $region50: #{rcab_forward.2} parent=39 // pred_check_branch
        %1125 = sbr.rel (%p1123) target = $region52
      $region51: #{rcab_forward.2} parent=39 // pred_region
        _
      $region52: #{rcab_forward.2} parent=39 // pred_fallthru
        _
    $region40: #{rcab_forward.2} parent=5 // pred_fallthru
      _
    %p1126 = scmp.le.s32.totalorder 2, %s11
    // Predicated region
    $region53: #{rcab_forward.2} parent=5 // pred_check
      %p1127 = pneg %p1126
    $region54: #{rcab_forward.2} parent=5 // pred_check_branch
      %1129 = sbr.rel (%p1127) target = $region56
    $region55: #{rcab_forward.2} parent=5 // pred_region
      %s1130 = ssub.s32 %s11, 2
      // Predicated region
      $region57: #{rcab_forward.2} parent=55 // pred_check
        %p1131 = pneg %p164
      $region58: #{rcab_forward.2} parent=55 // pred_check_branch
        %1133 = sbr.rel (%p1131) target = $region60
      $region59: #{rcab_forward.2} parent=55 // pred_region
        %p1134 = scmp.lt.s32.totalorder %s22, 1
        %s1135 = scalar_select %p1134, %s22, 1
        %s1136 = smul.addr %s1135, 24
        %s1137 = smul.addr %s1136, 8
        %s1138 = scalar_lea.vmem %s5, %s1137
      $region60: #{rcab_forward.2} parent=55 // pred_fallthru
        _
    $region56: #{rcab_forward.2} parent=5 // pred_fallthru
      _
  $region6: #{rcab_forward.2} parent=0 // loop_footer
    %s15 = sadd.s32 1, %s11
  $region7: #{rcab_forward.2} parent=0 // loop_footer_branch
    %10 = sbr.rel target = $region3
  $region8: #{rcab_forward.2} parent=0 // loop_exit
    _

</llo_original>
